<compile_context>
chip_gen: v7x
topology: tpu7x:2x2x1
jax: 0.10.0
libtpu: 0.0.40
codegen_flags: <defaults>
</compile_context>

<pallas_src>
import functools

import jax
import jax.numpy as jnp
from jax.experimental import pallas as pl
from jax.experimental.pallas import tpu as pltpu


CFG = dict(
    vocab=100, max_pos=16, type_vocab=2,
    emb=16, hidden=32, heads=4, dh=8,
    inter=64, layers=2, num_labels=2,
)
LN_EPS = 1e-12


# ----------------------------------------------------------------- in-kernel math helpers
def _gelu(x):
    # exact (erf-based) GELU, matching HF "gelu"
    return 0.5 * x * (1.0 + jax.lax.erf(x * 0.7071067811865476))


def _layernorm(x, g, b, eps=LN_EPS):
    mu = jnp.mean(x, axis=-1, keepdims=True)
    var = jnp.mean(jnp.square(x - mu), axis=-1, keepdims=True)
    return (x - mu) * jax.lax.rsqrt(var + eps) * g + b


def _mm(x, w):
    # bf16 MXU feed (weights are already bf16 from the wrapper), f32 accumulate.
    return jnp.dot(x.astype(jnp.bfloat16), w.astype(jnp.bfloat16),
                   preferred_element_type=jnp.float32)


def _mm_nt(x, y):
    # x @ y.T expressed via dot_general (contract last dims) -- no explicit transpose.
    return jax.lax.dot_general(
        x.astype(jnp.bfloat16), y.astype(jnp.bfloat16),
        (((1,), (1,)), ((), ())), preferred_element_type=jnp.float32)


# ----------------------------------------------------------------- fused encoder kernel
def _electra_kernel(
    # grid-invariant inputs
    emb_ref, bias_ref,
    emb_ln_g_ref, emb_ln_b_ref, proj_w_ref, proj_b_ref,
    # per-layer stacked weights (leading layer axis picked by the index_map)
    qkv_w_ref, qkv_b_ref, ao_w_ref, ao_b_ref,
    ln1_g_ref, ln1_b_ref, i_w_ref, i_b_ref, o_w_ref, o_b_ref,
    ln2_g_ref, ln2_b_ref,
    # classification head
    cls_w_ref, cls_b_ref, out_w_ref, out_b_ref,
    # output / scratch
    logits_ref, h_ref,
    *, nH, dh, scale,
):
    layer = pl.program_id(0)
    H = nH * dh

    # ---- prologue: embedding LayerNorm + embeddings_project (plain-LN path) ----
    @pl.when(layer == 0)
    def _prologue():
        e = _layernorm(emb_ref[...], emb_ln_g_ref[...], emb_ln_b_ref[...])
        h_ref[...] = _mm(e, proj_w_ref[...]) + proj_b_ref[...]

    h = h_ref[...]                                        # (M, H), VMEM-resident carry

    # ---- self-attention: fused QKV, per-head lane slices, flat-token softmax ----
    qkv = _mm(h, qkv_w_ref[0]) + qkv_b_ref[0]             # (M, 3H), f32
    bias = bias_ref[...]                                  # (M, M) additive mask, f32

    ctx_heads = []
    for hd in range(nH):
        lo = hd * dh
        qh = qkv[:, lo:lo + dh] * scale                   # scale folded into Q (M, dh)
        kh = qkv[:, H + lo:H + lo + dh]
        vh = qkv[:, 2 * H + lo:2 * H + lo + dh]
        s = _mm_nt(qh, kh) + bias                         # (M, M), f32
        s_max = jnp.max(s, axis=-1, keepdims=True)
        e_s = jnp.exp(s - s_max)
        inv = pl.reciprocal(jnp.sum(e_s, axis=-1, keepdims=True), approx=True)
        p = e_s * inv
        ctx_heads.append(_mm(p, vh))                      # (M, dh)
    ctx = jnp.concatenate(ctx_heads, axis=-1)             # (M, H) == HF merged-head layout

    attn_out = _mm(ctx, ao_w_ref[0]) + ao_b_ref[0]
    h1 = _layernorm(attn_out + h, ln1_g_ref[0], ln1_b_ref[0])

    # ---- feed-forward ----
    inter = _gelu(_mm(h1, i_w_ref[0]) + i_b_ref[0])
    ff = _mm(inter, o_w_ref[0]) + o_b_ref[0]
    h2 = _layernorm(ff + h1, ln2_g_ref[0], ln2_b_ref[0])

    h_ref[...] = h2                                       # carry to next layer

    # ---- epilogue: classification head fused into the last grid step ----
    @pl.when(layer == pl.num_programs(0) - 1)
    def _epilogue():
        x = _gelu(_mm(h2, cls_w_ref[...]) + cls_b_ref[...])
        logits_ref[...] = _mm(x, out_w_ref[...]) + out_b_ref[...]


# ----------------------------------------------------------------------------- params
def init_params(key, cfg):
    keys = iter(jax.random.split(key, 64))

    def nrm(shape, std=0.02):
        return (std * jax.random.normal(next(keys), shape)).astype(jnp.float32)

    E, H, I, L = cfg["emb"], cfg["hidden"], cfg["inter"], cfg["layers"]
    NL = cfg["num_labels"]
    return {
        "word_emb": nrm((cfg["vocab"], E)),
        "pos_emb": nrm((cfg["max_pos"], E)),
        "type_emb": nrm((cfg["type_vocab"], E)),
        "emb_ln_g": jnp.ones((1, E), jnp.float32),
        "emb_ln_b": jnp.zeros((1, E), jnp.float32),
        "proj_w": nrm((E, H)), "proj_b": jnp.zeros((1, H), jnp.float32),
        # per-layer weights stacked along a leading layer axis; Q/K/V merged -> (H, 3H)
        "qkv_w": nrm((L, H, 3 * H)), "qkv_b": jnp.zeros((L, 1, 3 * H), jnp.float32),
        "ao_w": nrm((L, H, H)), "ao_b": jnp.zeros((L, 1, H), jnp.float32),
        "ln1_g": jnp.ones((L, 1, H), jnp.float32), "ln1_b": jnp.zeros((L, 1, H), jnp.float32),
        "i_w": nrm((L, H, I)), "i_b": jnp.zeros((L, 1, I), jnp.float32),
        "o_w": nrm((L, I, H)), "o_b": jnp.zeros((L, 1, H), jnp.float32),
        "ln2_g": jnp.ones((L, 1, H), jnp.float32), "ln2_b": jnp.zeros((L, 1, H), jnp.float32),
        "cls_dense_w": nrm((H, H)), "cls_dense_b": jnp.zeros((1, H), jnp.float32),
        "cls_out_w": nrm((H, NL)), "cls_out_b": jnp.zeros((1, NL), jnp.float32),
    }


# ----------------------------------------------------------------------------- forward
def electra_forward(params, input_ids, attention_mask, cfg):
    """Returns logits of shape (B, num_labels) — Electra.forward(hook=False)."""
    B, S = input_ids.shape
    E, H, I = cfg["emb"], cfg["hidden"], cfg["inter"]
    nH, dh, L, NL = cfg["heads"], cfg["dh"], cfg["layers"], cfg["num_labels"]
    M = B * S

    # --- embeddings: gather + positional + token-type (glue; XLA fuses it) ---
    emb = (jnp.take(params["word_emb"], input_ids, axis=0)
           + params["pos_emb"][:S][None, :, :]
           + params["type_emb"][0][None, None, :])            # token_type_ids = 0
    emb = emb.reshape(M, E).astype(jnp.float32)

    # --- additive attention bias on the flattened token axis: 0 where (same batch AND
    #     key not padded), -1e9 elsewhere.  No nH-times broadcast is ever materialized. ---
    key_ok = attention_mask.reshape(M).astype(jnp.float32) > 0.5
    batch_id = jnp.repeat(jnp.arange(B, dtype=jnp.int32), S)
    allowed = (batch_id[:, None] == batch_id[None, :]) & key_ok[None, :]
    bias = jnp.where(allowed, 0.0, -1e9).astype(jnp.float32)  # (M, M)

    # --- matmul weights go to the MXU in bf16: cast once host-side (halves weight DMA,
    #     removes per-grid-step casts in the kernel).  LN params / biases stay f32. ---
    bf = lambda w: w.astype(jnp.bfloat16)
    proj_w = bf(params["proj_w"])
    qkv_w, ao_w = bf(params["qkv_w"]), bf(params["ao_w"])
    i_w, o_w = bf(params["i_w"]), bf(params["o_w"])
    cls_w, out_w = bf(params["cls_dense_w"]), bf(params["cls_out_w"])

    def full(shape):
        return pl.BlockSpec(shape, lambda l: (0,) * len(shape))

    def per_layer(tail):
        return pl.BlockSpec((1,) + tail, lambda l: (l,) + (0,) * len(tail))

    kernel = functools.partial(_electra_kernel, nH=nH, dh=dh, scale=1.0 / (dh ** 0.5))

    logits_all = pl.pallas_call(
        kernel,
        out_shape=jax.ShapeDtypeStruct((M, NL), jnp.float32),
        grid=(L,),
        in_specs=[
            full((M, E)), full((M, M)),
            full((1, E)), full((1, E)), full((E, H)), full((1, H)),
            per_layer((H, 3 * H)), per_layer((1, 3 * H)),
            per_layer((H, H)), per_layer((1, H)),
            per_layer((1, H)), per_layer((1, H)),
            per_layer((H, I)), per_layer((1, I)),
            per_layer((I, H)), per_layer((1, H)),
            per_layer((1, H)), per_layer((1, H)),
            full((H, H)), full((1, H)), full((H, NL)), full((1, NL)),
        ],
        out_specs=full((M, NL)),
        scratch_shapes=[pltpu.VMEM((M, H), jnp.float32)],
        compiler_params=pltpu.CompilerParams(dimension_semantics=("arbitrary",)),
    )(
        emb, bias,
        params["emb_ln_g"], params["emb_ln_b"], proj_w, params["proj_b"],
        qkv_w, params["qkv_b"], ao_w, params["ao_b"],
        params["ln1_g"], params["ln1_b"], i_w, params["i_b"],
        o_w, params["o_b"], params["ln2_g"], params["ln2_b"],
        cls_w, params["cls_dense_b"],
        out_w, params["cls_out_b"],
    )

    # Head is applied row-wise to every token in the fused epilogue (cheaper than a
    # separate launch at these sizes); select the CLS rows here (pure glue slice).
    return logits_all.reshape(B, S, NL)[:, 0, :]


# ----------------------------------------------------------------------------- main
if __name__ == "__main__":
    key = jax.random.PRNGKey(0)
    k_par, k_ids = jax.random.split(key)

    params = init_params(k_par, CFG)

    B, S = 2, 8
    input_ids = jax.random.randint(k_ids, (B, S), 0, CFG["vocab"], dtype=jnp.int32)
    attention_mask = jnp.array(
        [[1, 1, 1, 1, 1, 1, 1, 1],
         [1, 1, 1, 1, 1, 1, 0, 0]], dtype=jnp.int32)

    fwd = jax.jit(functools.partial(electra_forward, cfg=CFG))
    logits = jax.block_until_ready(fwd(params, input_ids, attention_mask))

    assert logits.shape == (B, CFG["num_labels"])
    assert bool(jnp.all(jnp.isfinite(logits)))
    print("KERNEL_OK")
</pallas_src>

<mosaic_0001>
module attributes {stable_mosaic.version = 11 : i64} {
  func.func @_electra_kernel(%arg0: i32, %arg1: memref<16x16xf32, #tpu.memory_space<vmem>>, %arg2: memref<16x16xf32, #tpu.memory_space<vmem>>, %arg3: memref<1x16xf32, #tpu.memory_space<vmem>>, %arg4: memref<1x16xf32, #tpu.memory_space<vmem>>, %arg5: memref<16x32xbf16, #tpu.memory_space<vmem>>, %arg6: memref<1x32xf32, #tpu.memory_space<vmem>>, %arg7: memref<1x32x96xbf16, #tpu.memory_space<vmem>>, %arg8: memref<1x1x96xf32, #tpu.memory_space<vmem>>, %arg9: memref<1x32x32xbf16, #tpu.memory_space<vmem>>, %arg10: memref<1x1x32xf32, #tpu.memory_space<vmem>>, %arg11: memref<1x1x32xf32, #tpu.memory_space<vmem>>, %arg12: memref<1x1x32xf32, #tpu.memory_space<vmem>>, %arg13: memref<1x32x64xbf16, #tpu.memory_space<vmem>>, %arg14: memref<1x1x64xf32, #tpu.memory_space<vmem>>, %arg15: memref<1x64x32xbf16, #tpu.memory_space<vmem>>, %arg16: memref<1x1x32xf32, #tpu.memory_space<vmem>>, %arg17: memref<1x1x32xf32, #tpu.memory_space<vmem>>, %arg18: memref<1x1x32xf32, #tpu.memory_space<vmem>>, %arg19: memref<32x32xbf16, #tpu.memory_space<vmem>>, %arg20: memref<1x32xf32, #tpu.memory_space<vmem>>, %arg21: memref<32x2xbf16, #tpu.memory_space<vmem>>, %arg22: memref<1x2xf32, #tpu.memory_space<vmem>>, %arg23: memref<16x2xf32, #tpu.memory_space<vmem>>, %arg24: memref<16x32xf32, #tpu.memory_space<vmem>>) attributes {dimension_semantics = [#tpu.dimension_semantics<arbitrary>], iteration_bounds = array<i64: 2>, scalar_prefetch = 0 : i64, scratch_operands = 1 : i64, tpu.core_type = #tpu.core_type<tc>, window_params = [{pipeline_mode = #tpu.pipeline_mode<synchronous>, transform_indices = @transform_0, window_bounds = array<i64: 16, 16>}, {pipeline_mode = #tpu.pipeline_mode<synchronous>, transform_indices = @transform_1, window_bounds = array<i64: 16, 16>}, {pipeline_mode = #tpu.pipeline_mode<synchronous>, transform_indices = @transform_2, window_bounds = array<i64: 1, 16>}, {pipeline_mode = #tpu.pipeline_mode<synchronous>, transform_indices = @transform_3, window_bounds = array<i64: 1, 16>}, {pipeline_mode = #tpu.pipeline_mode<synchronous>, transform_indices = @transform_4, window_bounds = array<i64: 16, 32>}, {pipeline_mode = #tpu.pipeline_mode<synchronous>, transform_indices = @transform_5, window_bounds = array<i64: 1, 32>}, {transform_indices = @transform_6, window_bounds = array<i64: 1, 32, 96>}, {transform_indices = @transform_7, window_bounds = array<i64: 1, 1, 96>}, {transform_indices = @transform_8, window_bounds = array<i64: 1, 32, 32>}, {transform_indices = @transform_9, window_bounds = array<i64: 1, 1, 32>}, {transform_indices = @transform_10, window_bounds = array<i64: 1, 1, 32>}, {transform_indices = @transform_11, window_bounds = array<i64: 1, 1, 32>}, {transform_indices = @transform_12, window_bounds = array<i64: 1, 32, 64>}, {transform_indices = @transform_13, window_bounds = array<i64: 1, 1, 64>}, {transform_indices = @transform_14, window_bounds = array<i64: 1, 64, 32>}, {transform_indices = @transform_15, window_bounds = array<i64: 1, 1, 32>}, {transform_indices = @transform_16, window_bounds = array<i64: 1, 1, 32>}, {transform_indices = @transform_17, window_bounds = array<i64: 1, 1, 32>}, {pipeline_mode = #tpu.pipeline_mode<synchronous>, transform_indices = @transform_18, window_bounds = array<i64: 32, 32>}, {pipeline_mode = #tpu.pipeline_mode<synchronous>, transform_indices = @transform_19, window_bounds = array<i64: 1, 32>}, {pipeline_mode = #tpu.pipeline_mode<synchronous>, transform_indices = @transform_20, window_bounds = array<i64: 32, 2>}, {pipeline_mode = #tpu.pipeline_mode<synchronous>, transform_indices = @transform_21, window_bounds = array<i64: 1, 2>}, {pipeline_mode = #tpu.pipeline_mode<synchronous>, transform_indices = @transform_22, window_bounds = array<i64: 16, 2>}]} {
    %c0_i32 = arith.constant 0 : i32
    %0 = arith.cmpi eq, %arg0, %c0_i32 : i32
    %1 = arith.extui %0 : i1 to i32
    %c0_i32_0 = arith.constant 0 : i32
    %2 = arith.cmpi ne, %1, %c0_i32_0 : i32
    scf.if %2 {
      %c0_79 = arith.constant 0 : index
      %c0_80 = arith.constant 0 : index
      %192 = vector.load %arg1[%c0_79, %c0_80] : memref<16x16xf32, #tpu.memory_space<vmem>>, vector<16x16xf32>
      %c0_81 = arith.constant 0 : index
      %c0_82 = arith.constant 0 : index
      %193 = vector.load %arg3[%c0_81, %c0_82] : memref<1x16xf32, #tpu.memory_space<vmem>>, vector<1x16xf32>
      %c0_83 = arith.constant 0 : index
      %c0_84 = arith.constant 0 : index
      %194 = vector.load %arg4[%c0_83, %c0_84] : memref<1x16xf32, #tpu.memory_space<vmem>>, vector<1x16xf32>
      %cst_85 = arith.constant dense<0.000000e+00> : vector<16xf32>
      %195 = vector.multi_reduction <add>, %192, %cst_85 [1] : vector<16x16xf32> to vector<16xf32>
      %196 = vector.shape_cast %195 : vector<16xf32> to vector<16x1xf32>
      %cst_86 = arith.constant 1.600000e+01 : f32
      %197 = vector.broadcast %cst_86 : f32 to vector<16x1xf32>
      %198 = arith.divf %196, %197 : vector<16x1xf32>
      %199 = vector.broadcast %198 : vector<16x1xf32> to vector<16x16xf32>
      %200 = arith.subf %192, %199 : vector<16x16xf32>
      %201 = arith.mulf %200, %200 : vector<16x16xf32>
      %cst_87 = arith.constant dense<0.000000e+00> : vector<16xf32>
      %202 = vector.multi_reduction <add>, %201, %cst_87 [1] : vector<16x16xf32> to vector<16xf32>
      %203 = vector.shape_cast %202 : vector<16xf32> to vector<16x1xf32>
      %cst_88 = arith.constant 1.600000e+01 : f32
      %204 = vector.broadcast %cst_88 : f32 to vector<16x1xf32>
      %205 = arith.divf %203, %204 : vector<16x1xf32>
      %206 = vector.broadcast %198 : vector<16x1xf32> to vector<16x16xf32>
      %207 = arith.subf %192, %206 : vector<16x16xf32>
      %cst_89 = arith.constant 9.99999996E-13 : f32
      %208 = vector.broadcast %cst_89 : f32 to vector<16x1xf32>
      %209 = arith.addf %205, %208 : vector<16x1xf32>
      %210 = math.rsqrt %209 : vector<16x1xf32>
      %211 = vector.broadcast %210 : vector<16x1xf32> to vector<16x16xf32>
      %212 = arith.mulf %207, %211 : vector<16x16xf32>
      %213 = vector.broadcast %193 : vector<1x16xf32> to vector<16x16xf32>
      %214 = arith.mulf %212, %213 : vector<16x16xf32>
      %215 = vector.broadcast %194 : vector<1x16xf32> to vector<16x16xf32>
      %216 = arith.addf %214, %215 : vector<16x16xf32>
      %c0_90 = arith.constant 0 : index
      %c0_91 = arith.constant 0 : index
      %217 = vector.load %arg5[%c0_90, %c0_91] : memref<16x32xbf16, #tpu.memory_space<vmem>>, vector<16x32xbf16>
      %218 = arith.truncf %216 : vector<16x16xf32> to vector<16x16xbf16>
      %cst_92 = arith.constant dense<0.000000e+00> : vector<16x32xf32>
      %219 = tpu.matmul %218, %217, %cst_92 {dimension_numbers = #tpu.dot_dimension_numbers<[1], [0], [0], [1], [0, 0, 1, 1], [], []>} : vector<16x16xbf16>, vector<16x32xbf16>, vector<16x32xf32> -> vector<16x32xf32>
      %c0_93 = arith.constant 0 : index
      %c0_94 = arith.constant 0 : index
      %220 = vector.load %arg6[%c0_93, %c0_94] : memref<1x32xf32, #tpu.memory_space<vmem>>, vector<1x32xf32>
      %221 = vector.broadcast %220 : vector<1x32xf32> to vector<16x32xf32>
      %222 = arith.addf %219, %221 : vector<16x32xf32>
      %c0_95 = arith.constant 0 : index
      %c0_96 = arith.constant 0 : index
      %223 = vector.load %arg24[%c0_95, %c0_96] : memref<16x32xf32, #tpu.memory_space<vmem>>, vector<16x32xf32>
      tpu.vector_store %arg24[%c0_95, %c0_96], %222 {strides = array<i32>} : memref<16x32xf32, #tpu.memory_space<vmem>>, vector<16x32xf32>,
    } else {
    }
    %c0 = arith.constant 0 : index
    %c0_1 = arith.constant 0 : index
    %3 = vector.load %arg24[%c0, %c0_1] : memref<16x32xf32, #tpu.memory_space<vmem>>, vector<16x32xf32>
    %c0_2 = arith.constant 0 : index
    %c0_3 = arith.constant 0 : index
    %c0_4 = arith.constant 0 : index
    %4 = vector.load %arg7[%c0_2, %c0_3, %c0_4] : memref<1x32x96xbf16, #tpu.memory_space<vmem>>, vector<1x32x96xbf16>
    %5 = vector.shape_cast %4 : vector<1x32x96xbf16> to vector<32x96xbf16>
    %6 = arith.truncf %3 : vector<16x32xf32> to vector<16x32xbf16>
    %cst = arith.constant dense<0.000000e+00> : vector<16x96xf32>
    %7 = tpu.matmul %6, %5, %cst {dimension_numbers = #tpu.dot_dimension_numbers<[1], [0], [0], [1], [0, 0, 1, 1], [], []>} : vector<16x32xbf16>, vector<32x96xbf16>, vector<16x96xf32> -> vector<16x96xf32>
    %c0_5 = arith.constant 0 : index
    %c0_6 = arith.constant 0 : index
    %c0_7 = arith.constant 0 : index
    %8 = vector.load %arg8[%c0_5, %c0_6, %c0_7] : memref<1x1x96xf32, #tpu.memory_space<vmem>>, vector<1x1x96xf32>
    %9 = vector.shape_cast %8 : vector<1x1x96xf32> to vector<1x96xf32>
    %10 = vector.broadcast %9 : vector<1x96xf32> to vector<16x96xf32>
    %11 = arith.addf %7, %10 : vector<16x96xf32>
    %c0_8 = arith.constant 0 : index
    %c0_9 = arith.constant 0 : index
    %12 = vector.load %arg2[%c0_8, %c0_9] : memref<16x16xf32, #tpu.memory_space<vmem>>, vector<16x16xf32>
    %13 = vector.extract_strided_slice %11 {offsets = [0, 0], sizes = [16, 8], strides = [1, 1]} : vector<16x96xf32> to vector<16x8xf32>
    %cst_10 = arith.constant 0.353553385 : f32
    %14 = vector.broadcast %cst_10 : f32 to vector<16x8xf32>
    %15 = arith.mulf %13, %14 : vector<16x8xf32>
    %16 = vector.extract_strided_slice %11 {offsets = [0, 32], sizes = [16, 8], strides = [1, 1]} : vector<16x96xf32> to vector<16x8xf32>
    %17 = vector.extract_strided_slice %11 {offsets = [0, 64], sizes = [16, 8], strides = [1, 1]} : vector<16x96xf32> to vector<16x8xf32>
    %18 = arith.truncf %15 : vector<16x8xf32> to vector<16x8xbf16>
    %19 = arith.truncf %16 : vector<16x8xf32> to vector<16x8xbf16>
    %cst_11 = arith.constant dense<0.000000e+00> : vector<16x16xf32>
    %20 = tpu.matmul %18, %19, %cst_11 {dimension_numbers = #tpu.dot_dimension_numbers<[1], [1], [0], [0], [0, 0, 1, 0], [], []>} : vector<16x8xbf16>, vector<16x8xbf16>, vector<16x16xf32> -> vector<16x16xf32>
    %21 = arith.addf %20, %12 : vector<16x16xf32>
    %cst_12 = arith.constant dense<0xFF800000> : vector<16xf32>
    %22 = vector.multi_reduction <maximumf>, %21, %cst_12 [1] : vector<16x16xf32> to vector<16xf32>
    %23 = vector.shape_cast %22 : vector<16xf32> to vector<16x1xf32>
    %24 = vector.broadcast %23 : vector<16x1xf32> to vector<16x16xf32>
    %25 = arith.subf %21, %24 : vector<16x16xf32>
    %26 = math.exp %25 : vector<16x16xf32>
    %cst_13 = arith.constant dense<0.000000e+00> : vector<16xf32>
    %27 = vector.multi_reduction <add>, %26, %cst_13 [1] : vector<16x16xf32> to vector<16xf32>
    %28 = vector.shape_cast %27 : vector<16xf32> to vector<16x1xf32>
    %29 = tpu.reciprocal %28 {approx = true} : vector<16x1xf32> -> vector<16x1xf32>
    %30 = vector.broadcast %29 : vector<16x1xf32> to vector<16x16xf32>
    %31 = arith.mulf %26, %30 : vector<16x16xf32>
    %32 = arith.truncf %31 : vector<16x16xf32> to vector<16x16xbf16>
    %33 = arith.truncf %17 : vector<16x8xf32> to vector<16x8xbf16>
    %cst_14 = arith.constant dense<0.000000e+00> : vector<16x8xf32>
    %34 = tpu.matmul %32, %33, %cst_14 {dimension_numbers = #tpu.dot_dimension_numbers<[1], [0], [0], [1], [0, 0, 1, 1], [], []>} : vector<16x16xbf16>, vector<16x8xbf16>, vector<16x8xf32> -> vector<16x8xf32>
    %35 = vector.extract_strided_slice %11 {offsets = [0, 8], sizes = [16, 8], strides = [1, 1]} : vector<16x96xf32> to vector<16x8xf32>
    %cst_15 = arith.constant 0.353553385 : f32
    %36 = vector.broadcast %cst_15 : f32 to vector<16x8xf32>
    %37 = arith.mulf %35, %36 : vector<16x8xf32>
    %38 = vector.extract_strided_slice %11 {offsets = [0, 40], sizes = [16, 8], strides = [1, 1]} : vector<16x96xf32> to vector<16x8xf32>
    %39 = vector.extract_strided_slice %11 {offsets = [0, 72], sizes = [16, 8], strides = [1, 1]} : vector<16x96xf32> to vector<16x8xf32>
    %40 = arith.truncf %37 : vector<16x8xf32> to vector<16x8xbf16>
    %41 = arith.truncf %38 : vector<16x8xf32> to vector<16x8xbf16>
    %cst_16 = arith.constant dense<0.000000e+00> : vector<16x16xf32>
    %42 = tpu.matmul %40, %41, %cst_16 {dimension_numbers = #tpu.dot_dimension_numbers<[1], [1], [0], [0], [0, 0, 1, 0], [], []>} : vector<16x8xbf16>, vector<16x8xbf16>, vector<16x16xf32> -> vector<16x16xf32>
    %43 = arith.addf %42, %12 : vector<16x16xf32>
    %cst_17 = arith.constant dense<0xFF800000> : vector<16xf32>
    %44 = vector.multi_reduction <maximumf>, %43, %cst_17 [1] : vector<16x16xf32> to vector<16xf32>
    %45 = vector.shape_cast %44 : vector<16xf32> to vector<16x1xf32>
    %46 = vector.broadcast %45 : vector<16x1xf32> to vector<16x16xf32>
    %47 = arith.subf %43, %46 : vector<16x16xf32>
    %48 = math.exp %47 : vector<16x16xf32>
    %cst_18 = arith.constant dense<0.000000e+00> : vector<16xf32>
    %49 = vector.multi_reduction <add>, %48, %cst_18 [1] : vector<16x16xf32> to vector<16xf32>
    %50 = vector.shape_cast %49 : vector<16xf32> to vector<16x1xf32>
    %51 = tpu.reciprocal %50 {approx = true} : vector<16x1xf32> -> vector<16x1xf32>
    %52 = vector.broadcast %51 : vector<16x1xf32> to vector<16x16xf32>
    %53 = arith.mulf %48, %52 : vector<16x16xf32>
    %54 = arith.truncf %53 : vector<16x16xf32> to vector<16x16xbf16>
    %55 = arith.truncf %39 : vector<16x8xf32> to vector<16x8xbf16>
    %cst_19 = arith.constant dense<0.000000e+00> : vector<16x8xf32>
    %56 = tpu.matmul %54, %55, %cst_19 {dimension_numbers = #tpu.dot_dimension_numbers<[1], [0], [0], [1], [0, 0, 1, 1], [], []>} : vector<16x16xbf16>, vector<16x8xbf16>, vector<16x8xf32> -> vector<16x8xf32>
    %57 = vector.extract_strided_slice %11 {offsets = [0, 16], sizes = [16, 8], strides = [1, 1]} : vector<16x96xf32> to vector<16x8xf32>
    %cst_20 = arith.constant 0.353553385 : f32
    %58 = vector.broadcast %cst_20 : f32 to vector<16x8xf32>
    %59 = arith.mulf %57, %58 : vector<16x8xf32>
    %60 = vector.extract_strided_slice %11 {offsets = [0, 48], sizes = [16, 8], strides = [1, 1]} : vector<16x96xf32> to vector<16x8xf32>
    %61 = vector.extract_strided_slice %11 {offsets = [0, 80], sizes = [16, 8], strides = [1, 1]} : vector<16x96xf32> to vector<16x8xf32>
    %62 = arith.truncf %59 : vector<16x8xf32> to vector<16x8xbf16>
    %63 = arith.truncf %60 : vector<16x8xf32> to vector<16x8xbf16>
    %cst_21 = arith.constant dense<0.000000e+00> : vector<16x16xf32>
    %64 = tpu.matmul %62, %63, %cst_21 {dimension_numbers = #tpu.dot_dimension_numbers<[1], [1], [0], [0], [0, 0, 1, 0], [], []>} : vector<16x8xbf16>, vector<16x8xbf16>, vector<16x16xf32> -> vector<16x16xf32>
    %65 = arith.addf %64, %12 : vector<16x16xf32>
    %cst_22 = arith.constant dense<0xFF800000> : vector<16xf32>
    %66 = vector.multi_reduction <maximumf>, %65, %cst_22 [1] : vector<16x16xf32> to vector<16xf32>
    %67 = vector.shape_cast %66 : vector<16xf32> to vector<16x1xf32>
    %68 = vector.broadcast %67 : vector<16x1xf32> to vector<16x16xf32>
    %69 = arith.subf %65, %68 : vector<16x16xf32>
    %70 = math.exp %69 : vector<16x16xf32>
    %cst_23 = arith.constant dense<0.000000e+00> : vector<16xf32>
    %71 = vector.multi_reduction <add>, %70, %cst_23 [1] : vector<16x16xf32> to vector<16xf32>
    %72 = vector.shape_cast %71 : vector<16xf32> to vector<16x1xf32>
    %73 = tpu.reciprocal %72 {approx = true} : vector<16x1xf32> -> vector<16x1xf32>
    %74 = vector.broadcast %73 : vector<16x1xf32> to vector<16x16xf32>
    %75 = arith.mulf %70, %74 : vector<16x16xf32>
    %76 = arith.truncf %75 : vector<16x16xf32> to vector<16x16xbf16>
    %77 = arith.truncf %61 : vector<16x8xf32> to vector<16x8xbf16>
    %cst_24 = arith.constant dense<0.000000e+00> : vector<16x8xf32>
    %78 = tpu.matmul %76, %77, %cst_24 {dimension_numbers = #tpu.dot_dimension_numbers<[1], [0], [0], [1], [0, 0, 1, 1], [], []>} : vector<16x16xbf16>, vector<16x8xbf16>, vector<16x8xf32> -> vector<16x8xf32>
    %79 = vector.extract_strided_slice %11 {offsets = [0, 24], sizes = [16, 8], strides = [1, 1]} : vector<16x96xf32> to vector<16x8xf32>
    %cst_25 = arith.constant 0.353553385 : f32
    %80 = vector.broadcast %cst_25 : f32 to vector<16x8xf32>
    %81 = arith.mulf %79, %80 : vector<16x8xf32>
    %82 = vector.extract_strided_slice %11 {offsets = [0, 56], sizes = [16, 8], strides = [1, 1]} : vector<16x96xf32> to vector<16x8xf32>
    %83 = vector.extract_strided_slice %11 {offsets = [0, 88], sizes = [16, 8], strides = [1, 1]} : vector<16x96xf32> to vector<16x8xf32>
    %84 = arith.truncf %81 : vector<16x8xf32> to vector<16x8xbf16>
    %85 = arith.truncf %82 : vector<16x8xf32> to vector<16x8xbf16>
    %cst_26 = arith.constant dense<0.000000e+00> : vector<16x16xf32>
    %86 = tpu.matmul %84, %85, %cst_26 {dimension_numbers = #tpu.dot_dimension_numbers<[1], [1], [0], [0], [0, 0, 1, 0], [], []>} : vector<16x8xbf16>, vector<16x8xbf16>, vector<16x16xf32> -> vector<16x16xf32>
    %87 = arith.addf %86, %12 : vector<16x16xf32>
    %cst_27 = arith.constant dense<0xFF800000> : vector<16xf32>
    %88 = vector.multi_reduction <maximumf>, %87, %cst_27 [1] : vector<16x16xf32> to vector<16xf32>
    %89 = vector.shape_cast %88 : vector<16xf32> to vector<16x1xf32>
    %90 = vector.broadcast %89 : vector<16x1xf32> to vector<16x16xf32>
    %91 = arith.subf %87, %90 : vector<16x16xf32>
    %92 = math.exp %91 : vector<16x16xf32>
    %cst_28 = arith.constant dense<0.000000e+00> : vector<16xf32>
    %93 = vector.multi_reduction <add>, %92, %cst_28 [1] : vector<16x16xf32> to vector<16xf32>
    %94 = vector.shape_cast %93 : vector<16xf32> to vector<16x1xf32>
    %95 = tpu.reciprocal %94 {approx = true} : vector<16x1xf32> -> vector<16x1xf32>
    %96 = vector.broadcast %95 : vector<16x1xf32> to vector<16x16xf32>
    %97 = arith.mulf %92, %96 : vector<16x16xf32>
    %98 = arith.truncf %97 : vector<16x16xf32> to vector<16x16xbf16>
    %99 = arith.truncf %83 : vector<16x8xf32> to vector<16x8xbf16>
    %cst_29 = arith.constant dense<0.000000e+00> : vector<16x8xf32>
    %100 = tpu.matmul %98, %99, %cst_29 {dimension_numbers = #tpu.dot_dimension_numbers<[1], [0], [0], [1], [0, 0, 1, 1], [], []>} : vector<16x16xbf16>, vector<16x8xbf16>, vector<16x8xf32> -> vector<16x8xf32>
    %101 = tpu.concatenate %34, %56, %78, %100 in 1 : vector<16x8xf32>, vector<16x8xf32>, vector<16x8xf32>, vector<16x8xf32> -> vector<16x32xf32>
    %c0_30 = arith.constant 0 : index
    %c0_31 = arith.constant 0 : index
    %c0_32 = arith.constant 0 : index
    %102 = vector.load %arg9[%c0_30, %c0_31, %c0_32] : memref<1x32x32xbf16, #tpu.memory_space<vmem>>, vector<1x32x32xbf16>
    %103 = vector.shape_cast %102 : vector<1x32x32xbf16> to vector<32x32xbf16>
    %104 = arith.truncf %101 : vector<16x32xf32> to vector<16x32xbf16>
    %cst_33 = arith.constant dense<0.000000e+00> : vector<16x32xf32>
    %105 = tpu.matmul %104, %103, %cst_33 {dimension_numbers = #tpu.dot_dimension_numbers<[1], [0], [0], [1], [0, 0, 1, 1], [], []>} : vector<16x32xbf16>, vector<32x32xbf16>, vector<16x32xf32> -> vector<16x32xf32>
    %c0_34 = arith.constant 0 : index
    %c0_35 = arith.constant 0 : index
    %c0_36 = arith.constant 0 : index
    %106 = vector.load %arg10[%c0_34, %c0_35, %c0_36] : memref<1x1x32xf32, #tpu.memory_space<vmem>>, vector<1x1x32xf32>
    %107 = vector.shape_cast %106 : vector<1x1x32xf32> to vector<1x32xf32>
    %108 = vector.broadcast %107 : vector<1x32xf32> to vector<16x32xf32>
    %109 = arith.addf %105, %108 : vector<16x32xf32>
    %110 = arith.addf %109, %3 : vector<16x32xf32>
    %c0_37 = arith.constant 0 : index
    %c0_38 = arith.constant 0 : index
    %c0_39 = arith.constant 0 : index
    %111 = vector.load %arg11[%c0_37, %c0_38, %c0_39] : memref<1x1x32xf32, #tpu.memory_space<vmem>>, vector<1x1x32xf32>
    %112 = vector.shape_cast %111 : vector<1x1x32xf32> to vector<1x32xf32>
    %c0_40 = arith.constant 0 : index
    %c0_41 = arith.constant 0 : index
    %c0_42 = arith.constant 0 : index
    %113 = vector.load %arg12[%c0_40, %c0_41, %c0_42] : memref<1x1x32xf32, #tpu.memory_space<vmem>>, vector<1x1x32xf32>
    %114 = vector.shape_cast %113 : vector<1x1x32xf32> to vector<1x32xf32>
    %cst_43 = arith.constant dense<0.000000e+00> : vector<16xf32>
    %115 = vector.multi_reduction <add>, %110, %cst_43 [1] : vector<16x32xf32> to vector<16xf32>
    %116 = vector.shape_cast %115 : vector<16xf32> to vector<16x1xf32>
    %cst_44 = arith.constant 3.200000e+01 : f32
    %117 = vector.broadcast %cst_44 : f32 to vector<16x1xf32>
    %118 = arith.divf %116, %117 : vector<16x1xf32>
    %119 = vector.broadcast %118 : vector<16x1xf32> to vector<16x32xf32>
    %120 = arith.subf %110, %119 : vector<16x32xf32>
    %121 = arith.mulf %120, %120 : vector<16x32xf32>
    %cst_45 = arith.constant dense<0.000000e+00> : vector<16xf32>
    %122 = vector.multi_reduction <add>, %121, %cst_45 [1] : vector<16x32xf32> to vector<16xf32>
    %123 = vector.shape_cast %122 : vector<16xf32> to vector<16x1xf32>
    %cst_46 = arith.constant 3.200000e+01 : f32
    %124 = vector.broadcast %cst_46 : f32 to vector<16x1xf32>
    %125 = arith.divf %123, %124 : vector<16x1xf32>
    %126 = vector.broadcast %118 : vector<16x1xf32> to vector<16x32xf32>
    %127 = arith.subf %110, %126 : vector<16x32xf32>
    %cst_47 = arith.constant 9.99999996E-13 : f32
    %128 = vector.broadcast %cst_47 : f32 to vector<16x1xf32>
    %129 = arith.addf %125, %128 : vector<16x1xf32>
    %130 = math.rsqrt %129 : vector<16x1xf32>
    %131 = vector.broadcast %130 : vector<16x1xf32> to vector<16x32xf32>
    %132 = arith.mulf %127, %131 : vector<16x32xf32>
    %133 = vector.broadcast %112 : vector<1x32xf32> to vector<16x32xf32>
    %134 = arith.mulf %132, %133 : vector<16x32xf32>
    %135 = vector.broadcast %114 : vector<1x32xf32> to vector<16x32xf32>
    %136 = arith.addf %134, %135 : vector<16x32xf32>
    %c0_48 = arith.constant 0 : index
    %c0_49 = arith.constant 0 : index
    %c0_50 = arith.constant 0 : index
    %137 = vector.load %arg13[%c0_48, %c0_49, %c0_50] : memref<1x32x64xbf16, #tpu.memory_space<vmem>>, vector<1x32x64xbf16>
    %138 = vector.shape_cast %137 : vector<1x32x64xbf16> to vector<32x64xbf16>
    %139 = arith.truncf %136 : vector<16x32xf32> to vector<16x32xbf16>
    %cst_51 = arith.constant dense<0.000000e+00> : vector<16x64xf32>
    %140 = tpu.matmul %139, %138, %cst_51 {dimension_numbers = #tpu.dot_dimension_numbers<[1], [0], [0], [1], [0, 0, 1, 1], [], []>} : vector<16x32xbf16>, vector<32x64xbf16>, vector<16x64xf32> -> vector<16x64xf32>
    %c0_52 = arith.constant 0 : index
    %c0_53 = arith.constant 0 : index
    %c0_54 = arith.constant 0 : index
    %141 = vector.load %arg14[%c0_52, %c0_53, %c0_54] : memref<1x1x64xf32, #tpu.memory_space<vmem>>, vector<1x1x64xf32>
    %142 = vector.shape_cast %141 : vector<1x1x64xf32> to vector<1x64xf32>
    %143 = vector.broadcast %142 : vector<1x64xf32> to vector<16x64xf32>
    %144 = arith.addf %140, %143 : vector<16x64xf32>
    %cst_55 = arith.constant 5.000000e-01 : f32
    %145 = vector.broadcast %cst_55 : f32 to vector<16x64xf32>
    %146 = arith.mulf %145, %144 : vector<16x64xf32>
    %cst_56 = arith.constant 0.707106769 : f32
    %147 = vector.broadcast %cst_56 : f32 to vector<16x64xf32>
    %148 = arith.mulf %144, %147 : vector<16x64xf32>
    %149 = math.erf %148 : vector<16x64xf32>
    %cst_57 = arith.constant 1.000000e+00 : f32
    %150 = vector.broadcast %cst_57 : f32 to vector<16x64xf32>
    %151 = arith.addf %150, %149 : vector<16x64xf32>
    %152 = arith.mulf %146, %151 : vector<16x64xf32>
    %c0_58 = arith.constant 0 : index
    %c0_59 = arith.constant 0 : index
    %c0_60 = arith.constant 0 : index
    %153 = vector.load %arg15[%c0_58, %c0_59, %c0_60] : memref<1x64x32xbf16, #tpu.memory_space<vmem>>, vector<1x64x32xbf16>
    %154 = vector.shape_cast %153 : vector<1x64x32xbf16> to vector<64x32xbf16>
    %155 = arith.truncf %152 : vector<16x64xf32> to vector<16x64xbf16>
    %cst_61 = arith.constant dense<0.000000e+00> : vector<16x32xf32>
    %156 = tpu.matmul %155, %154, %cst_61 {dimension_numbers = #tpu.dot_dimension_numbers<[1], [0], [0], [1], [0, 0, 1, 1], [], []>} : vector<16x64xbf16>, vector<64x32xbf16>, vector<16x32xf32> -> vector<16x32xf32>
    %c0_62 = arith.constant 0 : index
    %c0_63 = arith.constant 0 : index
    %c0_64 = arith.constant 0 : index
    %157 = vector.load %arg16[%c0_62, %c0_63, %c0_64] : memref<1x1x32xf32, #tpu.memory_space<vmem>>, vector<1x1x32xf32>
    %158 = vector.shape_cast %157 : vector<1x1x32xf32> to vector<1x32xf32>
    %159 = vector.broadcast %158 : vector<1x32xf32> to vector<16x32xf32>
    %160 = arith.addf %156, %159 : vector<16x32xf32>
    %161 = arith.addf %160, %136 : vector<16x32xf32>
    %c0_65 = arith.constant 0 : index
    %c0_66 = arith.constant 0 : index
    %c0_67 = arith.constant 0 : index
    %162 = vector.load %arg17[%c0_65, %c0_66, %c0_67] : memref<1x1x32xf32, #tpu.memory_space<vmem>>, vector<1x1x32xf32>
    %163 = vector.shape_cast %162 : vector<1x1x32xf32> to vector<1x32xf32>
    %c0_68 = arith.constant 0 : index
    %c0_69 = arith.constant 0 : index
    %c0_70 = arith.constant 0 : index
    %164 = vector.load %arg18[%c0_68, %c0_69, %c0_70] : memref<1x1x32xf32, #tpu.memory_space<vmem>>, vector<1x1x32xf32>
    %165 = vector.shape_cast %164 : vector<1x1x32xf32> to vector<1x32xf32>
    %cst_71 = arith.constant dense<0.000000e+00> : vector<16xf32>
    %166 = vector.multi_reduction <add>, %161, %cst_71 [1] : vector<16x32xf32> to vector<16xf32>
    %167 = vector.shape_cast %166 : vector<16xf32> to vector<16x1xf32>
    %cst_72 = arith.constant 3.200000e+01 : f32
    %168 = vector.broadcast %cst_72 : f32 to vector<16x1xf32>
    %169 = arith.divf %167, %168 : vector<16x1xf32>
    %170 = vector.broadcast %169 : vector<16x1xf32> to vector<16x32xf32>
    %171 = arith.subf %161, %170 : vector<16x32xf32>
    %172 = arith.mulf %171, %171 : vector<16x32xf32>
    %cst_73 = arith.constant dense<0.000000e+00> : vector<16xf32>
    %173 = vector.multi_reduction <add>, %172, %cst_73 [1] : vector<16x32xf32> to vector<16xf32>
    %174 = vector.shape_cast %173 : vector<16xf32> to vector<16x1xf32>
    %cst_74 = arith.constant 3.200000e+01 : f32
    %175 = vector.broadcast %cst_74 : f32 to vector<16x1xf32>
    %176 = arith.divf %174, %175 : vector<16x1xf32>
    %177 = vector.broadcast %169 : vector<16x1xf32> to vector<16x32xf32>
    %178 = arith.subf %161, %177 : vector<16x32xf32>
    %cst_75 = arith.constant 9.99999996E-13 : f32
    %179 = vector.broadcast %cst_75 : f32 to vector<16x1xf32>
    %180 = arith.addf %176, %179 : vector<16x1xf32>
    %181 = math.rsqrt %180 : vector<16x1xf32>
    %182 = vector.broadcast %181 : vector<16x1xf32> to vector<16x32xf32>
    %183 = arith.mulf %178, %182 : vector<16x32xf32>
    %184 = vector.broadcast %163 : vector<1x32xf32> to vector<16x32xf32>
    %185 = arith.mulf %183, %184 : vector<16x32xf32>
    %186 = vector.broadcast %165 : vector<1x32xf32> to vector<16x32xf32>
    %187 = arith.addf %185, %186 : vector<16x32xf32>
    %c0_76 = arith.constant 0 : index
    %c0_77 = arith.constant 0 : index
    %188 = vector.load %arg24[%c0_76, %c0_77] : memref<16x32xf32, #tpu.memory_space<vmem>>, vector<16x32xf32>
    tpu.vector_store %arg24[%c0_76, %c0_77], %187 {strides = array<i32>} : memref<16x32xf32, #tpu.memory_space<vmem>>, vector<16x32xf32>,
    %c1_i32 = arith.constant 1 : i32
    %189 = arith.cmpi eq, %arg0, %c1_i32 : i32
    %190 = arith.extui %189 : i1 to i32
    %c0_i32_78 = arith.constant 0 : i32
    %191 = arith.cmpi ne, %190, %c0_i32_78 : i32
    scf.if %191 {
      %c0_79 = arith.constant 0 : index
      %c0_80 = arith.constant 0 : index
      %192 = vector.load %arg19[%c0_79, %c0_80] : memref<32x32xbf16, #tpu.memory_space<vmem>>, vector<32x32xbf16>
      %193 = arith.truncf %187 : vector<16x32xf32> to vector<16x32xbf16>
      %cst_81 = arith.constant dense<0.000000e+00> : vector<16x32xf32>
      %194 = tpu.matmul %193, %192, %cst_81 {dimension_numbers = #tpu.dot_dimension_numbers<[1], [0], [0], [1], [0, 0, 1, 1], [], []>} : vector<16x32xbf16>, vector<32x32xbf16>, vector<16x32xf32> -> vector<16x32xf32>
      %c0_82 = arith.constant 0 : index
      %c0_83 = arith.constant 0 : index
      %195 = vector.load %arg20[%c0_82, %c0_83] : memref<1x32xf32, #tpu.memory_space<vmem>>, vector<1x32xf32>
      %196 = vector.broadcast %195 : vector<1x32xf32> to vector<16x32xf32>
      %197 = arith.addf %194, %196 : vector<16x32xf32>
      %cst_84 = arith.constant 5.000000e-01 : f32
      %198 = vector.broadcast %cst_84 : f32 to vector<16x32xf32>
      %199 = arith.mulf %198, %197 : vector<16x32xf32>
      %cst_85 = arith.constant 0.707106769 : f32
      %200 = vector.broadcast %cst_85 : f32 to vector<16x32xf32>
      %201 = arith.mulf %197, %200 : vector<16x32xf32>
      %202 = math.erf %201 : vector<16x32xf32>
      %cst_86 = arith.constant 1.000000e+00 : f32
      %203 = vector.broadcast %cst_86 : f32 to vector<16x32xf32>
      %204 = arith.addf %203, %202 : vector<16x32xf32>
      %205 = arith.mulf %199, %204 : vector<16x32xf32>
      %c0_87 = arith.constant 0 : index
      %c0_88 = arith.constant 0 : index
      %206 = vector.load %arg21[%c0_87, %c0_88] : memref<32x2xbf16, #tpu.memory_space<vmem>>, vector<32x2xbf16>
      %207 = arith.truncf %205 : vector<16x32xf32> to vector<16x32xbf16>
      %cst_89 = arith.constant dense<0.000000e+00> : vector<16x2xf32>
      %208 = tpu.matmul %207, %206, %cst_89 {dimension_numbers = #tpu.dot_dimension_numbers<[1], [0], [0], [1], [0, 0, 1, 1], [], []>} : vector<16x32xbf16>, vector<32x2xbf16>, vector<16x2xf32> -> vector<16x2xf32>
      %c0_90 = arith.constant 0 : index
      %c0_91 = arith.constant 0 : index
      %209 = vector.load %arg22[%c0_90, %c0_91] : memref<1x2xf32, #tpu.memory_space<vmem>>, vector<1x2xf32>
      %210 = vector.broadcast %209 : vector<1x2xf32> to vector<16x2xf32>
      %211 = arith.addf %208, %210 : vector<16x2xf32>
      %c0_92 = arith.constant 0 : index
      %c0_93 = arith.constant 0 : index
      %212 = vector.load %arg23[%c0_92, %c0_93] : memref<16x2xf32, #tpu.memory_space<vmem>>, vector<16x2xf32>
      tpu.vector_store %arg23[%c0_92, %c0_93], %211 {strides = array<i32>} : memref<16x2xf32, #tpu.memory_space<vmem>>, vector<16x2xf32>,
    } else {
    }
    return
  }
  func.func @transform_0(%arg0: i32) -> (i32, i32) {
    %c0_i32 = arith.constant 0 : i32
    %c0_i32_0 = arith.constant 0 : i32
    %c0_i32_1 = arith.constant 0 : i32
    return %c0_i32, %c0_i32_0 : i32, i32
  }
  func.func @transform_1(%arg0: i32) -> (i32, i32) {
    %c0_i32 = arith.constant 0 : i32
    %c0_i32_0 = arith.constant 0 : i32
    %c0_i32_1 = arith.constant 0 : i32
    return %c0_i32, %c0_i32_0 : i32, i32
  }
  func.func @transform_2(%arg0: i32) -> (i32, i32) {
    %c0_i32 = arith.constant 0 : i32
    %c0_i32_0 = arith.constant 0 : i32
    %c0_i32_1 = arith.constant 0 : i32
    return %c0_i32, %c0_i32_0 : i32, i32
  }
  func.func @transform_3(%arg0: i32) -> (i32, i32) {
    %c0_i32 = arith.constant 0 : i32
    %c0_i32_0 = arith.constant 0 : i32
    %c0_i32_1 = arith.constant 0 : i32
    return %c0_i32, %c0_i32_0 : i32, i32
  }
  func.func @transform_4(%arg0: i32) -> (i32, i32) {
    %c0_i32 = arith.constant 0 : i32
    %c0_i32_0 = arith.constant 0 : i32
    %c0_i32_1 = arith.constant 0 : i32
    return %c0_i32, %c0_i32_0 : i32, i32
  }
  func.func @transform_5(%arg0: i32) -> (i32, i32) {
    %c0_i32 = arith.constant 0 : i32
    %c0_i32_0 = arith.constant 0 : i32
    %c0_i32_1 = arith.constant 0 : i32
    return %c0_i32, %c0_i32_0 : i32, i32
  }
  func.func @transform_6(%arg0: i32) -> (i32, i32, i32) {
    %c0_i32 = arith.constant 0 : i32
    %c0_i32_0 = arith.constant 0 : i32
    %c0_i32_1 = arith.constant 0 : i32
    return %arg0, %c0_i32, %c0_i32_0 : i32, i32, i32
  }
  func.func @transform_7(%arg0: i32) -> (i32, i32, i32) {
    %c0_i32 = arith.constant 0 : i32
    %c0_i32_0 = arith.constant 0 : i32
    %c0_i32_1 = arith.constant 0 : i32
    return %arg0, %c0_i32, %c0_i32_0 : i32, i32, i32
  }
  func.func @transform_8(%arg0: i32) -> (i32, i32, i32) {
    %c0_i32 = arith.constant 0 : i32
    %c0_i32_0 = arith.constant 0 : i32
    %c0_i32_1 = arith.constant 0 : i32
    return %arg0, %c0_i32, %c0_i32_0 : i32, i32, i32
  }
  func.func @transform_9(%arg0: i32) -> (i32, i32, i32) {
    %c0_i32 = arith.constant 0 : i32
    %c0_i32_0 = arith.constant 0 : i32
    %c0_i32_1 = arith.constant 0 : i32
    return %arg0, %c0_i32, %c0_i32_0 : i32, i32, i32
  }
  func.func @transform_10(%arg0: i32) -> (i32, i32, i32) {
    %c0_i32 = arith.constant 0 : i32
    %c0_i32_0 = arith.constant 0 : i32
    %c0_i32_1 = arith.constant 0 : i32
    return %arg0, %c0_i32, %c0_i32_0 : i32, i32, i32
  }
  func.func @transform_11(%arg0: i32) -> (i32, i32, i32) {
    %c0_i32 = arith.constant 0 : i32
    %c0_i32_0 = arith.constant 0 : i32
    %c0_i32_1 = arith.constant 0 : i32
    return %arg0, %c0_i32, %c0_i32_0 : i32, i32, i32
  }
  func.func @transform_12(%arg0: i32) -> (i32, i32, i32) {
    %c0_i32 = arith.constant 0 : i32
    %c0_i32_0 = arith.constant 0 : i32
    %c0_i32_1 = arith.constant 0 : i32
    return %arg0, %c0_i32, %c0_i32_0 : i32, i32, i32
  }
  func.func @transform_13(%arg0: i32) -> (i32, i32, i32) {
    %c0_i32 = arith.constant 0 : i32
    %c0_i32_0 = arith.constant 0 : i32
    %c0_i32_1 = arith.constant 0 : i32
    return %arg0, %c0_i32, %c0_i32_0 : i32, i32, i32
  }
  func.func @transform_14(%arg0: i32) -> (i32, i32, i32) {
    %c0_i32 = arith.constant 0 : i32
    %c0_i32_0 = arith.constant 0 : i32
    %c0_i32_1 = arith.constant 0 : i32
    return %arg0, %c0_i32, %c0_i32_0 : i32, i32, i32
  }
  func.func @transform_15(%arg0: i32) -> (i32, i32, i32) {
    %c0_i32 = arith.constant 0 : i32
    %c0_i32_0 = arith.constant 0 : i32
    %c0_i32_1 = arith.constant 0 : i32
    return %arg0, %c0_i32, %c0_i32_0 : i32, i32, i32
  }
  func.func @transform_16(%arg0: i32) -> (i32, i32, i32) {
    %c0_i32 = arith.constant 0 : i32
    %c0_i32_0 = arith.constant 0 : i32
    %c0_i32_1 = arith.constant 0 : i32
    return %arg0, %c0_i32, %c0_i32_0 : i32, i32, i32
  }
  func.func @transform_17(%arg0: i32) -> (i32, i32, i32) {
    %c0_i32 = arith.constant 0 : i32
    %c0_i32_0 = arith.constant 0 : i32
    %c0_i32_1 = arith.constant 0 : i32
    return %arg0, %c0_i32, %c0_i32_0 : i32, i32, i32
  }
  func.func @transform_18(%arg0: i32) -> (i32, i32) {
    %c0_i32 = arith.constant 0 : i32
    %c0_i32_0 = arith.constant 0 : i32
    %c0_i32_1 = arith.constant 0 : i32
    return %c0_i32, %c0_i32_0 : i32, i32
  }
  func.func @transform_19(%arg0: i32) -> (i32, i32) {
    %c0_i32 = arith.constant 0 : i32
    %c0_i32_0 = arith.constant 0 : i32
    %c0_i32_1 = arith.constant 0 : i32
    return %c0_i32, %c0_i32_0 : i32, i32
  }
  func.func @transform_20(%arg0: i32) -> (i32, i32) {
    %c0_i32 = arith.constant 0 : i32
    %c0_i32_0 = arith.constant 0 : i32
    %c0_i32_1 = arith.constant 0 : i32
    return %c0_i32, %c0_i32_0 : i32, i32
  }
  func.func @transform_21(%arg0: i32) -> (i32, i32) {
    %c0_i32 = arith.constant 0 : i32
    %c0_i32_0 = arith.constant 0 : i32
    %c0_i32_1 = arith.constant 0 : i32
    return %c0_i32, %c0_i32_0 : i32, i32
  }
  func.func @transform_22(%arg0: i32) -> (i32, i32) {
    %c0_i32 = arith.constant 0 : i32
    %c0_i32_0 = arith.constant 0 : i32
    %c0_i32_1 = arith.constant 0 : i32
    return %c0_i32, %c0_i32_0 : i32, i32
  }
}

</mosaic_0001>

<llo_original>
// kernel: electra_forward.1
$region0: #{electra_forward.1}
  #allocation0 [shape = 'u32[]', space=smem, size = 0x4, offset = 0x4, fixed_abs, tag = 'smem constant byte address 0x4 - core index']
  #allocation1 [shape = 'u32[144,128]{1,0:T(1,128)}', space=vmem, size = 0x12000, scoped, tag = 'internal scratch']
  #allocation2 [shape = 'f32[16,32]{1,0:T(8,128)}', space=vmem, size = 0x2000, scoped, tag = 'scratch operand']
  %s0 = inlined_call_operand.vmem [shape: f32[16,16], index: 0, kind: input, shape index: {}]
  %s1 = inlined_call_operand.vmem [shape: f32[16,16], index: 1, kind: input, shape index: {}]
  %s2 = inlined_call_operand.vmem [shape: f32[1,16], index: 2, kind: input, shape index: {}]
  %s3 = inlined_call_operand.vmem [shape: f32[1,16], index: 3, kind: input, shape index: {}]
  %s4 = inlined_call_operand.vmem [shape: bf16[16,32], index: 4, kind: input, shape index: {}]
  %s5 = inlined_call_operand.vmem [shape: f32[1,32], index: 5, kind: input, shape index: {}]
  %s6 = inlined_call_operand.vmem [shape: bf16[2,32,96], index: 6, kind: input, shape index: {}]
  %s7 = inlined_call_operand.vmem [shape: f32[2,1,96], index: 7, kind: input, shape index: {}]
  %s8 = inlined_call_operand.vmem [shape: bf16[2,32,32], index: 8, kind: input, shape index: {}]
  %s9 = inlined_call_operand.vmem [shape: f32[2,1,32], index: 9, kind: input, shape index: {}]
  %s10 = inlined_call_operand.vmem [shape: f32[2,1,32], index: 10, kind: input, shape index: {}]
  %s11 = inlined_call_operand.vmem [shape: f32[2,1,32], index: 11, kind: input, shape index: {}]
  %s12 = inlined_call_operand.vmem [shape: bf16[2,32,64], index: 12, kind: input, shape index: {}]
  %s13 = inlined_call_operand.vmem [shape: f32[2,1,64], index: 13, kind: input, shape index: {}]
  %s14 = inlined_call_operand.vmem [shape: bf16[2,64,32], index: 14, kind: input, shape index: {}]
  %s15 = inlined_call_operand.vmem [shape: f32[2,1,32], index: 15, kind: input, shape index: {}]
  %s16 = inlined_call_operand.vmem [shape: f32[2,1,32], index: 16, kind: input, shape index: {}]
  %s17 = inlined_call_operand.vmem [shape: f32[2,1,32], index: 17, kind: input, shape index: {}]
  %s18 = inlined_call_operand.vmem [shape: bf16[32,32], index: 18, kind: input, shape index: {}]
  %s19 = inlined_call_operand.vmem [shape: f32[1,32], index: 19, kind: input, shape index: {}]
  %s20 = inlined_call_operand.vmem [shape: bf16[32,2], index: 20, kind: input, shape index: {}]
  %s21 = inlined_call_operand.vmem [shape: f32[1,2], index: 21, kind: input, shape index: {}]
  %s22 = inlined_call_operand.vmem [shape: f32[16,2], index: 22, kind: output, shape index: {}]
  %s23 = sld [smem:[#allocation0]]
  $region129: #{electra_forward.1} parent=0
    _
  %s25 = ssub.s32 1, %s23
  %s26 = scalar_select 0, %s25, %s23
  loop: start=0, step=1, limit=4
  $region2: #{electra_forward.1} parent=0 // loop_pre_header
    _
  $region3: #{electra_forward.1} parent=0 // loop_header
    %s28 = sphi 0, %s32
    %p29 = scmp.ge.s32.totalorder %s28, 4
    %s36 = sphi 0, %s36
    %s38 = sphi 0, %s36
    %s39 = sphi 0, %s38
    %s53 = sphi 0, %s39
    %s57 = sphi 0, %s57
    %s59 = sphi 0, %s57
    %s60 = sphi 0, %s59
    %s74 = sphi 0, %s60
    %s78 = sphi 0, %s78
    %s80 = sphi 0, %s78
    %s81 = sphi 0, %s80
    %s95 = sphi 0, %s81
    %s99 = sphi 0, %s99
    %s101 = sphi 0, %s99
    %s102 = sphi 0, %s101
    %s116 = sphi 0, %s102
    %s120 = sphi 0, %s120
    %s122 = sphi 0, %s120
    %s123 = sphi 0, %s122
    %s137 = sphi 0, %s123
    %s141 = sphi 0, %s141
    %s143 = sphi 0, %s141
    %s144 = sphi 0, %s143
    %s158 = sphi 0, %s144
    %s164 = sphi 0, %s166
    %s167 = sphi 0, %s164
    %s168 = sphi 0, %s167
    %s184 = sphi 0, %s168
    %s190 = sphi 0, %s192
    %s193 = sphi 0, %s190
    %s194 = sphi 0, %s193
    %s210 = sphi 0, %s194
    %s216 = sphi 0, %s218
    %s219 = sphi 0, %s216
    %s220 = sphi 0, %s219
    %s236 = sphi 0, %s220
    %s242 = sphi 0, %s244
    %s245 = sphi 0, %s242
    %s246 = sphi 0, %s245
    %s262 = sphi 0, %s246
    %s268 = sphi 0, %s270
    %s271 = sphi 0, %s268
    %s272 = sphi 0, %s271
    %s288 = sphi 0, %s272
    %s294 = sphi 0, %s296
    %s297 = sphi 0, %s294
    %s298 = sphi 0, %s297
    %s314 = sphi 0, %s298
    %s320 = sphi 0, %s322
    %s323 = sphi 0, %s320
    %s324 = sphi 0, %s323
    %s340 = sphi 0, %s324
    %s346 = sphi 0, %s348
    %s349 = sphi 0, %s346
    %s350 = sphi 0, %s349
    %s366 = sphi 0, %s350
    %s372 = sphi 0, %s374
    %s375 = sphi 0, %s372
    %s376 = sphi 0, %s375
    %s392 = sphi 0, %s376
    %s398 = sphi 0, %s400
    %s401 = sphi 0, %s398
    %s402 = sphi 0, %s401
    %s418 = sphi 0, %s402
    %s424 = sphi 0, %s426
    %s427 = sphi 0, %s424
    %s428 = sphi 0, %s427
    %s444 = sphi 0, %s428
    %s450 = sphi 0, %s452
    %s453 = sphi 0, %s450
    %s454 = sphi 0, %s453
    %s470 = sphi 0, %s454
    %s474 = sphi 0, %s474
    %s476 = sphi 0, %s474
    %s477 = sphi 0, %s476
    %s491 = sphi 0, %s477
    %s495 = sphi 0, %s495
    %s497 = sphi 0, %s495
    %s498 = sphi 0, %s497
    %s512 = sphi 0, %s498
    %s516 = sphi 0, %s516
    %s518 = sphi 0, %s516
    %s519 = sphi 0, %s518
    %s533 = sphi 0, %s519
    %s537 = sphi 0, %s537
    %s539 = sphi 0, %s537
    %s540 = sphi 0, %s539
    %s554 = sphi 0, %s540
    %s558 = sphi 0, %s558
    %s560 = sphi 0, %s558
    %s561 = sphi 0, %s560
    %s575 = sphi 0, %s561
  $region4: #{electra_forward.1} parent=0 // loop_header_branch
    %31 = sbr.rel (%p29) target = $region8
  $region5: #{electra_forward.1} parent=0 // loop_body
    %s33 = ssub.s32 %s28, 1
    %s34 = ssub.s32 %s28, 2
    %s35 = sadd.s32 %s28, 1
    %s37 = sadd.s32 %s36, 1
    %p40 = scmp.eq.s32.totalorder %s28, 1
    %p41 = scmp.ne.s32.totalorder %s36, %s38
    %p42 = scmp.eq.s32.totalorder %s28, 0
    %p43 = por %p41, %p42
    %p44 = scmp.ne.s32.totalorder %s36, %s38
    %p45 = scmp.eq.s32.totalorder %s33, 1
    %p46 = por %p44, %p45
    %p47 = scmp.ne.s32.totalorder %s38, %s39
    %p48 = scmp.eq.s32.totalorder %s33, 0
    %p49 = por %p47, %p48
    %p50 = scmp.ne.s32.totalorder %s38, %s39
    %p51 = scmp.eq.s32.totalorder %s34, 1
    %p52 = por %p50, %p51
    %p54 = scmp.ne.s32.totalorder %s39, %s53
    %p55 = scmp.eq.s32.totalorder %s34, 0
    %p56 = por %p54, %p55
    %s58 = sadd.s32 %s57, 1
    %p61 = scmp.eq.s32.totalorder %s28, 1
    %p62 = scmp.ne.s32.totalorder %s57, %s59
    %p63 = scmp.eq.s32.totalorder %s28, 0
    %p64 = por %p62, %p63
    %p65 = scmp.ne.s32.totalorder %s57, %s59
    %p66 = scmp.eq.s32.totalorder %s33, 1
    %p67 = por %p65, %p66
    %p68 = scmp.ne.s32.totalorder %s59, %s60
    %p69 = scmp.eq.s32.totalorder %s33, 0
    %p70 = por %p68, %p69
    %p71 = scmp.ne.s32.totalorder %s59, %s60
    %p72 = scmp.eq.s32.totalorder %s34, 1
    %p73 = por %p71, %p72
    %p75 = scmp.ne.s32.totalorder %s60, %s74
    %p76 = scmp.eq.s32.totalorder %s34, 0
    %p77 = por %p75, %p76
    %s79 = sadd.s32 %s78, 1
    %p82 = scmp.eq.s32.totalorder %s28, 1
    %p83 = scmp.ne.s32.totalorder %s78, %s80
    %p84 = scmp.eq.s32.totalorder %s28, 0
    %p85 = por %p83, %p84
    %p86 = scmp.ne.s32.totalorder %s78, %s80
    %p87 = scmp.eq.s32.totalorder %s33, 1
    %p88 = por %p86, %p87
    %p89 = scmp.ne.s32.totalorder %s80, %s81
    %p90 = scmp.eq.s32.totalorder %s33, 0
    %p91 = por %p89, %p90
    %p92 = scmp.ne.s32.totalorder %s80, %s81
    %p93 = scmp.eq.s32.totalorder %s34, 1
    %p94 = por %p92, %p93
    %p96 = scmp.ne.s32.totalorder %s81, %s95
    %p97 = scmp.eq.s32.totalorder %s34, 0
    %p98 = por %p96, %p97
    %s100 = sadd.s32 %s99, 1
    %p103 = scmp.eq.s32.totalorder %s28, 1
    %p104 = scmp.ne.s32.totalorder %s99, %s101
    %p105 = scmp.eq.s32.totalorder %s28, 0
    %p106 = por %p104, %p105
    %p107 = scmp.ne.s32.totalorder %s99, %s101
    %p108 = scmp.eq.s32.totalorder %s33, 1
    %p109 = por %p107, %p108
    %p110 = scmp.ne.s32.totalorder %s101, %s102
    %p111 = scmp.eq.s32.totalorder %s33, 0
    %p112 = por %p110, %p111
    %p113 = scmp.ne.s32.totalorder %s101, %s102
    %p114 = scmp.eq.s32.totalorder %s34, 1
    %p115 = por %p113, %p114
    %p117 = scmp.ne.s32.totalorder %s102, %s116
    %p118 = scmp.eq.s32.totalorder %s34, 0
    %p119 = por %p117, %p118
    %s121 = sadd.s32 %s120, 1
    %p124 = scmp.eq.s32.totalorder %s28, 1
    %p125 = scmp.ne.s32.totalorder %s120, %s122
    %p126 = scmp.eq.s32.totalorder %s28, 0
    %p127 = por %p125, %p126
    %p128 = scmp.ne.s32.totalorder %s120, %s122
    %p129 = scmp.eq.s32.totalorder %s33, 1
    %p130 = por %p128, %p129
    %p131 = scmp.ne.s32.totalorder %s122, %s123
    %p132 = scmp.eq.s32.totalorder %s33, 0
    %p133 = por %p131, %p132
    %p134 = scmp.ne.s32.totalorder %s122, %s123
    %p135 = scmp.eq.s32.totalorder %s34, 1
    %p136 = por %p134, %p135
    %p138 = scmp.ne.s32.totalorder %s123, %s137
    %p139 = scmp.eq.s32.totalorder %s34, 0
    %p140 = por %p138, %p139
    %s142 = sadd.s32 %s141, 1
    %p145 = scmp.eq.s32.totalorder %s28, 1
    %p146 = scmp.ne.s32.totalorder %s141, %s143
    %p147 = scmp.eq.s32.totalorder %s28, 0
    %p148 = por %p146, %p147
    %p149 = scmp.ne.s32.totalorder %s141, %s143
    %p150 = scmp.eq.s32.totalorder %s33, 1
    %p151 = por %p149, %p150
    %p152 = scmp.ne.s32.totalorder %s143, %s144
    %p153 = scmp.eq.s32.totalorder %s33, 0
    %p154 = por %p152, %p153
    %p155 = scmp.ne.s32.totalorder %s143, %s144
    %p156 = scmp.eq.s32.totalorder %s34, 1
    %p157 = por %p155, %p156
    %p159 = scmp.ne.s32.totalorder %s144, %s158
    %p160 = scmp.eq.s32.totalorder %s34, 0
    %p161 = por %p159, %p160
    %s162 = ssub.s32 %s28, %s35
    %p163 = scmp.eq.s32.totalorder %s162, 0
    %s165 = sadd.s32 %s164, 1
    %s166 = scalar_select %p163, %s164, %s165
    %p169 = pneg %p163
    %p170 = scmp.eq.s32.totalorder %s28, 1
    %p171 = por %p169, %p170
    %p172 = scmp.ne.s32.totalorder %s164, %s167
    %p173 = scmp.eq.s32.totalorder %s28, 0
    %p174 = por %p172, %p173
    %p175 = scmp.ne.s32.totalorder %s164, %s167
    %p176 = scmp.eq.s32.totalorder %s33, 1
    %p177 = por %p175, %p176
    %p178 = scmp.ne.s32.totalorder %s167, %s168
    %p179 = scmp.eq.s32.totalorder %s33, 0
    %p180 = por %p178, %p179
    %p181 = scmp.ne.s32.totalorder %s167, %s168
    %p182 = scmp.eq.s32.totalorder %s34, 1
    %p183 = por %p181, %p182
    %p185 = scmp.ne.s32.totalorder %s168, %s184
    %p186 = scmp.eq.s32.totalorder %s34, 0
    %p187 = por %p185, %p186
    %s188 = ssub.s32 %s28, %s35
    %p189 = scmp.eq.s32.totalorder %s188, 0
    %s191 = sadd.s32 %s190, 1
    %s192 = scalar_select %p189, %s190, %s191
    %p195 = pneg %p189
    %p196 = scmp.eq.s32.totalorder %s28, 1
    %p197 = por %p195, %p196
    %p198 = scmp.ne.s32.totalorder %s190, %s193
    %p199 = scmp.eq.s32.totalorder %s28, 0
    %p200 = por %p198, %p199
    %p201 = scmp.ne.s32.totalorder %s190, %s193
    %p202 = scmp.eq.s32.totalorder %s33, 1
    %p203 = por %p201, %p202
    %p204 = scmp.ne.s32.totalorder %s193, %s194
    %p205 = scmp.eq.s32.totalorder %s33, 0
    %p206 = por %p204, %p205
    %p207 = scmp.ne.s32.totalorder %s193, %s194
    %p208 = scmp.eq.s32.totalorder %s34, 1
    %p209 = por %p207, %p208
    %p211 = scmp.ne.s32.totalorder %s194, %s210
    %p212 = scmp.eq.s32.totalorder %s34, 0
    %p213 = por %p211, %p212
    %s214 = ssub.s32 %s28, %s35
    %p215 = scmp.eq.s32.totalorder %s214, 0
    %s217 = sadd.s32 %s216, 1
    %s218 = scalar_select %p215, %s216, %s217
    %p221 = pneg %p215
    %p222 = scmp.eq.s32.totalorder %s28, 1
    %p223 = por %p221, %p222
    %p224 = scmp.ne.s32.totalorder %s216, %s219
    %p225 = scmp.eq.s32.totalorder %s28, 0
    %p226 = por %p224, %p225
    %p227 = scmp.ne.s32.totalorder %s216, %s219
    %p228 = scmp.eq.s32.totalorder %s33, 1
    %p229 = por %p227, %p228
    %p230 = scmp.ne.s32.totalorder %s219, %s220
    %p231 = scmp.eq.s32.totalorder %s33, 0
    %p232 = por %p230, %p231
    %p233 = scmp.ne.s32.totalorder %s219, %s220
    %p234 = scmp.eq.s32.totalorder %s34, 1
    %p235 = por %p233, %p234
    %p237 = scmp.ne.s32.totalorder %s220, %s236
    %p238 = scmp.eq.s32.totalorder %s34, 0
    %p239 = por %p237, %p238
    %s240 = ssub.s32 %s28, %s35
    %p241 = scmp.eq.s32.totalorder %s240, 0
    %s243 = sadd.s32 %s242, 1
    %s244 = scalar_select %p241, %s242, %s243
    %p247 = pneg %p241
    %p248 = scmp.eq.s32.totalorder %s28, 1
    %p249 = por %p247, %p248
    %p250 = scmp.ne.s32.totalorder %s242, %s245
    %p251 = scmp.eq.s32.totalorder %s28, 0
    %p252 = por %p250, %p251
    %p253 = scmp.ne.s32.totalorder %s242, %s245
    %p254 = scmp.eq.s32.totalorder %s33, 1
    %p255 = por %p253, %p254
    %p256 = scmp.ne.s32.totalorder %s245, %s246
    %p257 = scmp.eq.s32.totalorder %s33, 0
    %p258 = por %p256, %p257
    %p259 = scmp.ne.s32.totalorder %s245, %s246
    %p260 = scmp.eq.s32.totalorder %s34, 1
    %p261 = por %p259, %p260
    %p263 = scmp.ne.s32.totalorder %s246, %s262
    %p264 = scmp.eq.s32.totalorder %s34, 0
    %p265 = por %p263, %p264
    %s266 = ssub.s32 %s28, %s35
    %p267 = scmp.eq.s32.totalorder %s266, 0
    %s269 = sadd.s32 %s268, 1
    %s270 = scalar_select %p267, %s268, %s269
    %p273 = pneg %p267
    %p274 = scmp.eq.s32.totalorder %s28, 1
    %p275 = por %p273, %p274
    %p276 = scmp.ne.s32.totalorder %s268, %s271
    %p277 = scmp.eq.s32.totalorder %s28, 0
    %p278 = por %p276, %p277
    %p279 = scmp.ne.s32.totalorder %s268, %s271
    %p280 = scmp.eq.s32.totalorder %s33, 1
    %p281 = por %p279, %p280
    %p282 = scmp.ne.s32.totalorder %s271, %s272
    %p283 = scmp.eq.s32.totalorder %s33, 0
    %p284 = por %p282, %p283
    %p285 = scmp.ne.s32.totalorder %s271, %s272
    %p286 = scmp.eq.s32.totalorder %s34, 1
    %p287 = por %p285, %p286
    %p289 = scmp.ne.s32.totalorder %s272, %s288
    %p290 = scmp.eq.s32.totalorder %s34, 0
    %p291 = por %p289, %p290
    %s292 = ssub.s32 %s28, %s35
    %p293 = scmp.eq.s32.totalorder %s292, 0
    %s295 = sadd.s32 %s294, 1
    %s296 = scalar_select %p293, %s294, %s295
    %p299 = pneg %p293
    %p300 = scmp.eq.s32.totalorder %s28, 1
    %p301 = por %p299, %p300
    %p302 = scmp.ne.s32.totalorder %s294, %s297
    %p303 = scmp.eq.s32.totalorder %s28, 0
    %p304 = por %p302, %p303
    %p305 = scmp.ne.s32.totalorder %s294, %s297
    %p306 = scmp.eq.s32.totalorder %s33, 1
    %p307 = por %p305, %p306
    %p308 = scmp.ne.s32.totalorder %s297, %s298
    %p309 = scmp.eq.s32.totalorder %s33, 0
    %p310 = por %p308, %p309
    %p311 = scmp.ne.s32.totalorder %s297, %s298
    %p312 = scmp.eq.s32.totalorder %s34, 1
    %p313 = por %p311, %p312
    %p315 = scmp.ne.s32.totalorder %s298, %s314
    %p316 = scmp.eq.s32.totalorder %s34, 0
    %p317 = por %p315, %p316
    %s318 = ssub.s32 %s28, %s35
    %p319 = scmp.eq.s32.totalorder %s318, 0
    %s321 = sadd.s32 %s320, 1
    %s322 = scalar_select %p319, %s320, %s321
    %p325 = pneg %p319
    %p326 = scmp.eq.s32.totalorder %s28, 1
    %p327 = por %p325, %p326
    %p328 = scmp.ne.s32.totalorder %s320, %s323
    %p329 = scmp.eq.s32.totalorder %s28, 0
    %p330 = por %p328, %p329
    %p331 = scmp.ne.s32.totalorder %s320, %s323
    %p332 = scmp.eq.s32.totalorder %s33, 1
    %p333 = por %p331, %p332
    %p334 = scmp.ne.s32.totalorder %s323, %s324
    %p335 = scmp.eq.s32.totalorder %s33, 0
    %p336 = por %p334, %p335
    %p337 = scmp.ne.s32.totalorder %s323, %s324
    %p338 = scmp.eq.s32.totalorder %s34, 1
    %p339 = por %p337, %p338
    %p341 = scmp.ne.s32.totalorder %s324, %s340
    %p342 = scmp.eq.s32.totalorder %s34, 0
    %p343 = por %p341, %p342
    %s344 = ssub.s32 %s28, %s35
    %p345 = scmp.eq.s32.totalorder %s344, 0
    %s347 = sadd.s32 %s346, 1
    %s348 = scalar_select %p345, %s346, %s347
    %p351 = pneg %p345
    %p352 = scmp.eq.s32.totalorder %s28, 1
    %p353 = por %p351, %p352
    %p354 = scmp.ne.s32.totalorder %s346, %s349
    %p355 = scmp.eq.s32.totalorder %s28, 0
    %p356 = por %p354, %p355
    %p357 = scmp.ne.s32.totalorder %s346, %s349
    %p358 = scmp.eq.s32.totalorder %s33, 1
    %p359 = por %p357, %p358
    %p360 = scmp.ne.s32.totalorder %s349, %s350
    %p361 = scmp.eq.s32.totalorder %s33, 0
    %p362 = por %p360, %p361
    %p363 = scmp.ne.s32.totalorder %s349, %s350
    %p364 = scmp.eq.s32.totalorder %s34, 1
    %p365 = por %p363, %p364
    %p367 = scmp.ne.s32.totalorder %s350, %s366
    %p368 = scmp.eq.s32.totalorder %s34, 0
    %p369 = por %p367, %p368
    %s370 = ssub.s32 %s28, %s35
    %p371 = scmp.eq.s32.totalorder %s370, 0
    %s373 = sadd.s32 %s372, 1
    %s374 = scalar_select %p371, %s372, %s373
    %p377 = pneg %p371
    %p378 = scmp.eq.s32.totalorder %s28, 1
    %p379 = por %p377, %p378
    %p380 = scmp.ne.s32.totalorder %s372, %s375
    %p381 = scmp.eq.s32.totalorder %s28, 0
    %p382 = por %p380, %p381
    %p383 = scmp.ne.s32.totalorder %s372, %s375
    %p384 = scmp.eq.s32.totalorder %s33, 1
    %p385 = por %p383, %p384
    %p386 = scmp.ne.s32.totalorder %s375, %s376
    %p387 = scmp.eq.s32.totalorder %s33, 0
    %p388 = por %p386, %p387
    %p389 = scmp.ne.s32.totalorder %s375, %s376
    %p390 = scmp.eq.s32.totalorder %s34, 1
    %p391 = por %p389, %p390
    %p393 = scmp.ne.s32.totalorder %s376, %s392
    %p394 = scmp.eq.s32.totalorder %s34, 0
    %p395 = por %p393, %p394
    %s396 = ssub.s32 %s28, %s35
    %p397 = scmp.eq.s32.totalorder %s396, 0
    %s399 = sadd.s32 %s398, 1
    %s400 = scalar_select %p397, %s398, %s399
    %p403 = pneg %p397
    %p404 = scmp.eq.s32.totalorder %s28, 1
    %p405 = por %p403, %p404
    %p406 = scmp.ne.s32.totalorder %s398, %s401
    %p407 = scmp.eq.s32.totalorder %s28, 0
    %p408 = por %p406, %p407
    %p409 = scmp.ne.s32.totalorder %s398, %s401
    %p410 = scmp.eq.s32.totalorder %s33, 1
    %p411 = por %p409, %p410
    %p412 = scmp.ne.s32.totalorder %s401, %s402
    %p413 = scmp.eq.s32.totalorder %s33, 0
    %p414 = por %p412, %p413
    %p415 = scmp.ne.s32.totalorder %s401, %s402
    %p416 = scmp.eq.s32.totalorder %s34, 1
    %p417 = por %p415, %p416
    %p419 = scmp.ne.s32.totalorder %s402, %s418
    %p420 = scmp.eq.s32.totalorder %s34, 0
    %p421 = por %p419, %p420
    %s422 = ssub.s32 %s28, %s35
    %p423 = scmp.eq.s32.totalorder %s422, 0
    %s425 = sadd.s32 %s424, 1
    %s426 = scalar_select %p423, %s424, %s425
    %p429 = pneg %p423
    %p430 = scmp.eq.s32.totalorder %s28, 1
    %p431 = por %p429, %p430
    %p432 = scmp.ne.s32.totalorder %s424, %s427
    %p433 = scmp.eq.s32.totalorder %s28, 0
    %p434 = por %p432, %p433
    %p435 = scmp.ne.s32.totalorder %s424, %s427
    %p436 = scmp.eq.s32.totalorder %s33, 1
    %p437 = por %p435, %p436
    %p438 = scmp.ne.s32.totalorder %s427, %s428
    %p439 = scmp.eq.s32.totalorder %s33, 0
    %p440 = por %p438, %p439
    %p441 = scmp.ne.s32.totalorder %s427, %s428
    %p442 = scmp.eq.s32.totalorder %s34, 1
    %p443 = por %p441, %p442
    %p445 = scmp.ne.s32.totalorder %s428, %s444
    %p446 = scmp.eq.s32.totalorder %s34, 0
    %p447 = por %p445, %p446
    %s448 = ssub.s32 %s28, %s35
    %p449 = scmp.eq.s32.totalorder %s448, 0
    %s451 = sadd.s32 %s450, 1
    %s452 = scalar_select %p449, %s450, %s451
    %p455 = pneg %p449
    %p456 = scmp.eq.s32.totalorder %s28, 1
    %p457 = por %p455, %p456
    %p458 = scmp.ne.s32.totalorder %s450, %s453
    %p459 = scmp.eq.s32.totalorder %s28, 0
    %p460 = por %p458, %p459
    %p461 = scmp.ne.s32.totalorder %s450, %s453
    %p462 = scmp.eq.s32.totalorder %s33, 1
    %p463 = por %p461, %p462
    %p464 = scmp.ne.s32.totalorder %s453, %s454
    %p465 = scmp.eq.s32.totalorder %s33, 0
    %p466 = por %p464, %p465
    %p467 = scmp.ne.s32.totalorder %s453, %s454
    %p468 = scmp.eq.s32.totalorder %s34, 1
    %p469 = por %p467, %p468
    %p471 = scmp.ne.s32.totalorder %s454, %s470
    %p472 = scmp.eq.s32.totalorder %s34, 0
    %p473 = por %p471, %p472
    %s475 = sadd.s32 %s474, 1
    %p478 = scmp.eq.s32.totalorder %s28, 1
    %p479 = scmp.ne.s32.totalorder %s474, %s476
    %p480 = scmp.eq.s32.totalorder %s28, 0
    %p481 = por %p479, %p480
    %p482 = scmp.ne.s32.totalorder %s474, %s476
    %p483 = scmp.eq.s32.totalorder %s33, 1
    %p484 = por %p482, %p483
    %p485 = scmp.ne.s32.totalorder %s476, %s477
    %p486 = scmp.eq.s32.totalorder %s33, 0
    %p487 = por %p485, %p486
    %p488 = scmp.ne.s32.totalorder %s476, %s477
    %p489 = scmp.eq.s32.totalorder %s34, 1
    %p490 = por %p488, %p489
    %p492 = scmp.ne.s32.totalorder %s477, %s491
    %p493 = scmp.eq.s32.totalorder %s34, 0
    %p494 = por %p492, %p493
    %s496 = sadd.s32 %s495, 1
    %p499 = scmp.eq.s32.totalorder %s28, 1
    %p500 = scmp.ne.s32.totalorder %s495, %s497
    %p501 = scmp.eq.s32.totalorder %s28, 0
    %p502 = por %p500, %p501
    %p503 = scmp.ne.s32.totalorder %s495, %s497
    %p504 = scmp.eq.s32.totalorder %s33, 1
    %p505 = por %p503, %p504
    %p506 = scmp.ne.s32.totalorder %s497, %s498
    %p507 = scmp.eq.s32.totalorder %s33, 0
    %p508 = por %p506, %p507
    %p509 = scmp.ne.s32.totalorder %s497, %s498
    %p510 = scmp.eq.s32.totalorder %s34, 1
    %p511 = por %p509, %p510
    %p513 = scmp.ne.s32.totalorder %s498, %s512
    %p514 = scmp.eq.s32.totalorder %s34, 0
    %p515 = por %p513, %p514
    %s517 = sadd.s32 %s516, 1
    %p520 = scmp.eq.s32.totalorder %s28, 1
    %p521 = scmp.ne.s32.totalorder %s516, %s518
    %p522 = scmp.eq.s32.totalorder %s28, 0
    %p523 = por %p521, %p522
    %p524 = scmp.ne.s32.totalorder %s516, %s518
    %p525 = scmp.eq.s32.totalorder %s33, 1
    %p526 = por %p524, %p525
    %p527 = scmp.ne.s32.totalorder %s518, %s519
    %p528 = scmp.eq.s32.totalorder %s33, 0
    %p529 = por %p527, %p528
    %p530 = scmp.ne.s32.totalorder %s518, %s519
    %p531 = scmp.eq.s32.totalorder %s34, 1
    %p532 = por %p530, %p531
    %p534 = scmp.ne.s32.totalorder %s519, %s533
    %p535 = scmp.eq.s32.totalorder %s34, 0
    %p536 = por %p534, %p535
    %s538 = sadd.s32 %s537, 1
    %p541 = scmp.eq.s32.totalorder %s28, 1
    %p542 = scmp.ne.s32.totalorder %s537, %s539
    %p543 = scmp.eq.s32.totalorder %s28, 0
    %p544 = por %p542, %p543
    %p545 = scmp.ne.s32.totalorder %s537, %s539
    %p546 = scmp.eq.s32.totalorder %s33, 1
    %p547 = por %p545, %p546
    %p548 = scmp.ne.s32.totalorder %s539, %s540
    %p549 = scmp.eq.s32.totalorder %s33, 0
    %p550 = por %p548, %p549
    %p551 = scmp.ne.s32.totalorder %s539, %s540
    %p552 = scmp.eq.s32.totalorder %s34, 1
    %p553 = por %p551, %p552
    %p555 = scmp.ne.s32.totalorder %s540, %s554
    %p556 = scmp.eq.s32.totalorder %s34, 0
    %p557 = por %p555, %p556
    %s559 = sadd.s32 %s558, 1
    %p562 = scmp.eq.s32.totalorder %s28, 1
    %p563 = scmp.ne.s32.totalorder %s558, %s560
    %p564 = scmp.eq.s32.totalorder %s28, 0
    %p565 = por %p563, %p564
    %p566 = scmp.ne.s32.totalorder %s558, %s560
    %p567 = scmp.eq.s32.totalorder %s33, 1
    %p568 = por %p566, %p567
    %p569 = scmp.ne.s32.totalorder %s560, %s561
    %p570 = scmp.eq.s32.totalorder %s33, 0
    %p571 = por %p569, %p570
    %p572 = scmp.ne.s32.totalorder %s560, %s561
    %p573 = scmp.eq.s32.totalorder %s34, 1
    %p574 = por %p572, %p573
    %p576 = scmp.ne.s32.totalorder %s561, %s575
    %p577 = scmp.eq.s32.totalorder %s34, 0
    %p578 = por %p576, %p577
    %p579 = scmp.le.s32.totalorder 1, %s28
    %p580 = scmp.lt.s32.totalorder %s28, 3
    %p581 = pnand %p579, %p580
    %p582 = pneg %p581
    // Predicated region
    $region9: #{electra_forward.1} parent=5 // pred_check
      _
    $region10: #{electra_forward.1} parent=5 // pred_check_branch
      %584 = sbr.rel (%p581) target = $region12
    $region11: #{electra_forward.1} parent=5 // pred_region
      %s585 = ssub.s32 %s28, 1
      // Predicated region
      $region13: #{electra_forward.1} parent=11 // pred_check
        %p586 = pneg %p49
      $region14: #{electra_forward.1} parent=11 // pred_check_branch
        %588 = sbr.rel (%p586) target = $region16
      $region15: #{electra_forward.1} parent=11 // pred_region
        _
      $region16: #{electra_forward.1} parent=11 // pred_fallthru
        _
      // Predicated region
      $region17: #{electra_forward.1} parent=11 // pred_check
        %p589 = pneg %p70
      $region18: #{electra_forward.1} parent=11 // pred_check_branch
        %591 = sbr.rel (%p589) target = $region20
      $region19: #{electra_forward.1} parent=11 // pred_region
        _
      $region20: #{electra_forward.1} parent=11 // pred_fallthru
        _
      // Predicated region
      $region21: #{electra_forward.1} parent=11 // pred_check
        %p592 = pneg %p91
      $region22: #{electra_forward.1} parent=11 // pred_check_branch
        %594 = sbr.rel (%p592) target = $region24
      $region23: #{electra_forward.1} parent=11 // pred_region
        _
      $region24: #{electra_forward.1} parent=11 // pred_fallthru
        _
      // Predicated region
      $region25: #{electra_forward.1} parent=11 // pred_check
        %p595 = pneg %p112
      $region26: #{electra_forward.1} parent=11 // pred_check_branch
        %597 = sbr.rel (%p595) target = $region28
      $region27: #{electra_forward.1} parent=11 // pred_region
        _
      $region28: #{electra_forward.1} parent=11 // pred_fallthru
        _
      // Predicated region
      $region29: #{electra_forward.1} parent=11 // pred_check
        %p598 = pneg %p133
      $region30: #{electra_forward.1} parent=11 // pred_check_branch
        %600 = sbr.rel (%p598) target = $region32
      $region31: #{electra_forward.1} parent=11 // pred_region
        _
      $region32: #{electra_forward.1} parent=11 // pred_fallthru
        _
      // Predicated region
      $region33: #{electra_forward.1} parent=11 // pred_check
        %p601 = pneg %p154
      $region34: #{electra_forward.1} parent=11 // pred_check_branch
        %603 = sbr.rel (%p601) target = $region36
      $region35: #{electra_forward.1} parent=11 // pred_region
        _
      $region36: #{electra_forward.1} parent=11 // pred_fallthru
        _
      // Predicated region
      $region37: #{electra_forward.1} parent=11 // pred_check
        %p604 = pneg %p487
      $region38: #{electra_forward.1} parent=11 // pred_check_branch
        %606 = sbr.rel (%p604) target = $region40
      $region39: #{electra_forward.1} parent=11 // pred_region
        _
      $region40: #{electra_forward.1} parent=11 // pred_fallthru
        _
      // Predicated region
      $region41: #{electra_forward.1} parent=11 // pred_check
        %p607 = pneg %p508
      $region42: #{electra_forward.1} parent=11 // pred_check_branch
        %609 = sbr.rel (%p607) target = $region44
      $region43: #{electra_forward.1} parent=11 // pred_region
        _
      $region44: #{electra_forward.1} parent=11 // pred_fallthru
        _
      // Predicated region
      $region45: #{electra_forward.1} parent=11 // pred_check
        %p610 = pneg %p529
      $region46: #{electra_forward.1} parent=11 // pred_check_branch
        %612 = sbr.rel (%p610) target = $region48
      $region47: #{electra_forward.1} parent=11 // pred_region
        _
      $region48: #{electra_forward.1} parent=11 // pred_fallthru
        _
      // Predicated region
      $region49: #{electra_forward.1} parent=11 // pred_check
        %p613 = pneg %p550
      $region50: #{electra_forward.1} parent=11 // pred_check_branch
        %615 = sbr.rel (%p613) target = $region52
      $region51: #{electra_forward.1} parent=11 // pred_region
        _
      $region52: #{electra_forward.1} parent=11 // pred_fallthru
        _
    $region12: #{electra_forward.1} parent=5 // pred_fallthru
      _
    %p616 = scmp.lt.s32.totalorder %s28, 2
    // Predicated region
    $region53: #{electra_forward.1} parent=5 // pred_check
      %p617 = pneg %p616
    $region54: #{electra_forward.1} parent=5 // pred_check_branch
      %619 = sbr.rel (%p617) target = $region56
    $region55: #{electra_forward.1} parent=5 // pred_region
      // Predicated region
      $region57: #{electra_forward.1} parent=55 // pred_check
        %p620 = pneg %p174
      $region58: #{electra_forward.1} parent=55 // pred_check_branch
        %622 = sbr.rel (%p620) target = $region60
      $region59: #{electra_forward.1} parent=55 // pred_region
        %p623 = scmp.lt.s32.totalorder %s28, 1
        %s624 = scalar_select %p623, %s28, 1
        %s625 = smul.addr %s624, 4
        %s626 = smul.addr %s625, 4
        %s627 = scalar_lea.vmem %s6, %s626
      $region60: #{electra_forward.1} parent=55 // pred_fallthru
        _
      // Predicated region
      $region61: #{electra_forward.1} parent=55 // pred_check
        %p628 = pneg %p200
      $region62: #{electra_forward.1} parent=55 // pred_check_branch
        %630 = sbr.rel (%p628) target = $region64
      $region63: #{electra_forward.1} parent=55 // pred_region
        %p631 = scmp.lt.s32.totalorder %s28, 1
        %s632 = scalar_select %p631, %s28, 1
        %s633 = scalar_lea.vmem %s7, %s632
      $region64: #{electra_forward.1} parent=55 // pred_fallthru
        _
      // Predicated region
      $region65: #{electra_forward.1} parent=55 // pred_check
        %p634 = pneg %p226
      $region66: #{electra_forward.1} parent=55 // pred_check_branch
        %636 = sbr.rel (%p634) target = $region68
      $region67: #{electra_forward.1} parent=55 // pred_region
        %p637 = scmp.lt.s32.totalorder %s28, 1
        %s638 = scalar_select %p637, %s28, 1
        %s639 = smul.addr %s638, 4
        %s640 = smul.addr %s639, 4
        %s641 = scalar_lea.vmem %s8, %s640
      $region68: #{electra_forward.1} parent=55 // pred_fallthru
        _
      // Predicated region
      $region69: #{electra_forward.1} parent=55 // pred_check
        %p642 = pneg %p252
      $region70: #{electra_forward.1} parent=55 // pred_check_branch
        %644 = sbr.rel (%p642) target = $region72
      $region71: #{electra_forward.1} parent=55 // pred_region
        %p645 = scmp.lt.s32.totalorder %s28, 1
        %s646 = scalar_select %p645, %s28, 1
        %s647 = scalar_lea.vmem %s9, %s646
      $region72: #{electra_forward.1} parent=55 // pred_fallthru
        _
      // Predicated region
      $region73: #{electra_forward.1} parent=55 // pred_check
        %p648 = pneg %p278
      $region74: #{electra_forward.1} parent=55 // pred_check_branch
        %650 = sbr.rel (%p648) target = $region76
      $region75: #{electra_forward.1} parent=55 // pred_region
        %p651 = scmp.lt.s32.totalorder %s28, 1
        %s652 = scalar_select %p651, %s28, 1
        %s653 = scalar_lea.vmem %s10, %s652
      $region76: #{electra_forward.1} parent=55 // pred_fallthru
        _
      // Predicated region
      $region77: #{electra_forward.1} parent=55 // pred_check
        %p654 = pneg %p304
      $region78: #{electra_forward.1} parent=55 // pred_check_branch
        %656 = sbr.rel (%p654) target = $region80
      $region79: #{electra_forward.1} parent=55 // pred_region
        %p657 = scmp.lt.s32.totalorder %s28, 1
        %s658 = scalar_select %p657, %s28, 1
        %s659 = scalar_lea.vmem %s11, %s658
      $region80: #{electra_forward.1} parent=55 // pred_fallthru
        _
      // Predicated region
      $region81: #{electra_forward.1} parent=55 // pred_check
        %p660 = pneg %p330
      $region82: #{electra_forward.1} parent=55 // pred_check_branch
        %662 = sbr.rel (%p660) target = $region84
      $region83: #{electra_forward.1} parent=55 // pred_region
        %p663 = scmp.lt.s32.totalorder %s28, 1
        %s664 = scalar_select %p663, %s28, 1
        %s665 = smul.addr %s664, 4
        %s666 = smul.addr %s665, 4
        %s667 = scalar_lea.vmem %s12, %s666
      $region84: #{electra_forward.1} parent=55 // pred_fallthru
        _
      // Predicated region
      $region85: #{electra_forward.1} parent=55 // pred_check
        %p668 = pneg %p356
      $region86: #{electra_forward.1} parent=55 // pred_check_branch
        %670 = sbr.rel (%p668) target = $region88
      $region87: #{electra_forward.1} parent=55 // pred_region
        %p671 = scmp.lt.s32.totalorder %s28, 1
        %s672 = scalar_select %p671, %s28, 1
        %s673 = scalar_lea.vmem %s13, %s672
      $region88: #{electra_forward.1} parent=55 // pred_fallthru
        _
      // Predicated region
      $region89: #{electra_forward.1} parent=55 // pred_check
        %p674 = pneg %p382
      $region90: #{electra_forward.1} parent=55 // pred_check_branch
        %676 = sbr.rel (%p674) target = $region92
      $region91: #{electra_forward.1} parent=55 // pred_region
        %p677 = scmp.lt.s32.totalorder %s28, 1
        %s678 = scalar_select %p677, %s28, 1
        %s679 = smul.addr %s678, 8
        %s680 = smul.addr %s679, 4
        %s681 = scalar_lea.vmem %s14, %s680
      $region92: #{electra_forward.1} parent=55 // pred_fallthru
        _
      // Predicated region
      $region93: #{electra_forward.1} parent=55 // pred_check
        %p682 = pneg %p408
      $region94: #{electra_forward.1} parent=55 // pred_check_branch
        %684 = sbr.rel (%p682) target = $region96
      $region95: #{electra_forward.1} parent=55 // pred_region
        %p685 = scmp.lt.s32.totalorder %s28, 1
        %s686 = scalar_select %p685, %s28, 1
        %s687 = scalar_lea.vmem %s15, %s686
      $region96: #{electra_forward.1} parent=55 // pred_fallthru
        _
      // Predicated region
      $region97: #{electra_forward.1} parent=55 // pred_check
        %p688 = pneg %p434
      $region98: #{electra_forward.1} parent=55 // pred_check_branch
        %690 = sbr.rel (%p688) target = $region100
      $region99: #{electra_forward.1} parent=55 // pred_region
        %p691 = scmp.lt.s32.totalorder %s28, 1
        %s692 = scalar_select %p691, %s28, 1
        %s693 = scalar_lea.vmem %s16, %s692
      $region100: #{electra_forward.1} parent=55 // pred_fallthru
        _
      // Predicated region
      $region101: #{electra_forward.1} parent=55 // pred_check
        %p694 = pneg %p460
      $region102: #{electra_forward.1} parent=55 // pred_check_branch
        %696 = sbr.rel (%p694) target = $region104
      $region103: #{electra_forward.1} parent=55 // pred_region
        %p697 = scmp.lt.s32.totalorder %s28, 1
        %s698 = scalar_select %p697, %s28, 1
        %s699 = scalar_lea.vmem %s17, %s698
      $region104: #{electra_forward.1} parent=55 // pred_fallthru
        _
    $region56: #{electra_forward.1} parent=5 // pred_fallthru
      _
    %p700 = scmp.le.s32.totalorder 1, %s28
    %p701 = scmp.lt.s32.totalorder %s28, 3
    %p702 = pnand %p700, %p701
    %p703 = pneg %p702
    // Predicated region
    $region105: #{electra_forward.1} parent=5 // pred_check
      _
    $region106: #{electra_forward.1} parent=5 // pred_check_branch
      %705 = sbr.rel (%p702) target = $region108
    $region107: #{electra_forward.1} parent=5 // pred_region
      %s706 = ssub.s32 %s28, 1
      %p707 = pneg %p49
      %p708 = pneg %p46
      %p709 = pneg %p70
      %p710 = pneg %p67
      %p711 = pneg %p91
      %p712 = pneg %p88
      %p713 = pneg %p112
      %p714 = pneg %p109
      %p715 = pneg %p133
      %p716 = pneg %p130
      %p717 = pneg %p154
      %p718 = pneg %p151
      %p719 = scmp.lt.s32.totalorder %s33, 1
      %s720 = scalar_select %p719, %s33, 1
      %s721 = smul.addr %s720, 4
      %s722 = smul.addr %s721, 4
      %s723 = scalar_lea.vmem %s6, %s722
      %p724 = pneg %p180
      %p725 = pneg %p177
      %p726 = scmp.lt.s32.totalorder %s33, 1
      %s727 = scalar_select %p726, %s33, 1
      %s728 = scalar_lea.vmem %s7, %s727
      %p729 = pneg %p206
      %p730 = pneg %p203
      %p731 = scmp.lt.s32.totalorder %s33, 1
      %s732 = scalar_select %p731, %s33, 1
      %s733 = smul.addr %s732, 4
      %s734 = smul.addr %s733, 4
      %s735 = scalar_lea.vmem %s8, %s734
      %p736 = pneg %p232
      %p737 = pneg %p229
      %p738 = scmp.lt.s32.totalorder %s33, 1
      %s739 = scalar_select %p738, %s33, 1
      %s740 = scalar_lea.vmem %s9, %s739
      %p741 = pneg %p258
      %p742 = pneg %p255
      %p743 = scmp.lt.s32.totalorder %s33, 1
      %s744 = scalar_select %p743, %s33, 1
      %s745 = scalar_lea.vmem %s10, %s744
      %p746 = pneg %p284
      %p747 = pneg %p281
      %p748 = scmp.lt.s32.totalorder %s33, 1
      %s749 = scalar_select %p748, %s33, 1
      %s750 = scalar_lea.vmem %s11, %s749
      %p751 = pneg %p310
      %p752 = pneg %p307
      %p753 = scmp.lt.s32.totalorder %s33, 1
      %s754 = scalar_select %p753, %s33, 1
      %s755 = smul.addr %s754, 4
      %s756 = smul.addr %s755, 4
      %s757 = scalar_lea.vmem %s12, %s756
      %p758 = pneg %p336
      %p759 = pneg %p333
      %p760 = scmp.lt.s32.totalorder %s33, 1
      %s761 = scalar_select %p760, %s33, 1
      %s762 = scalar_lea.vmem %s13, %s761
      %p763 = pneg %p362
      %p764 = pneg %p359
      %p765 = scmp.lt.s32.totalorder %s33, 1
      %s766 = scalar_select %p765, %s33, 1
      %s767 = smul.addr %s766, 8
      %s768 = smul.addr %s767, 4
      %s769 = scalar_lea.vmem %s14, %s768
      %p770 = pneg %p388
      %p771 = pneg %p385
      %p772 = scmp.lt.s32.totalorder %s33, 1
      %s773 = scalar_select %p772, %s33, 1
      %s774 = scalar_lea.vmem %s15, %s773
      %p775 = pneg %p414
      %p776 = pneg %p411
      %p777 = scmp.lt.s32.totalorder %s33, 1
      %s778 = scalar_select %p777, %s33, 1
      %s779 = scalar_lea.vmem %s16, %s778
      %p780 = pneg %p440
      %p781 = pneg %p437
      %p782 = scmp.lt.s32.totalorder %s33, 1
      %s783 = scalar_select %p782, %s33, 1
      %s784 = scalar_lea.vmem %s17, %s783
      %p785 = pneg %p466
      %p786 = pneg %p463
      %p787 = pneg %p487
      %p788 = pneg %p484
      %p789 = pneg %p508
      %p790 = pneg %p505
      %p791 = pneg %p529
      %p792 = pneg %p526
      %p793 = pneg %p550
      %p794 = pneg %p547
      %p795 = pneg %p571
      %p796 = pneg %p568
      %p797 = scmp.lt.s32.totalorder %s33, 1
      %s798 = scalar_select %p797, %s33, 1
      %s799 = smul.addr %s798, 4
      %s800 = smul.addr %s799, 4
      %s801 = scalar_lea.vmem %s6, %s800
      %p802 = scmp.lt.s32.totalorder %s33, 1
      %s803 = scalar_select %p802, %s33, 1
      %s804 = scalar_lea.vmem %s7, %s803
      %p805 = scmp.lt.s32.totalorder %s33, 1
      %s806 = scalar_select %p805, %s33, 1
      %s807 = smul.addr %s806, 4
      %s808 = smul.addr %s807, 4
      %s809 = scalar_lea.vmem %s8, %s808
      %p810 = scmp.lt.s32.totalorder %s33, 1
      %s811 = scalar_select %p810, %s33, 1
      %s812 = scalar_lea.vmem %s9, %s811
      %p813 = scmp.lt.s32.totalorder %s33, 1
      %s814 = scalar_select %p813, %s33, 1
      %s815 = scalar_lea.vmem %s10, %s814
      %p816 = scmp.lt.s32.totalorder %s33, 1
      %s817 = scalar_select %p816, %s33, 1
      %s818 = scalar_lea.vmem %s11, %s817
      %p819 = scmp.lt.s32.totalorder %s33, 1
      %s820 = scalar_select %p819, %s33, 1
      %s821 = smul.addr %s820, 4
      %s822 = smul.addr %s821, 4
      %s823 = scalar_lea.vmem %s12, %s822
      %p824 = scmp.lt.s32.totalorder %s33, 1
      %s825 = scalar_select %p824, %s33, 1
      %s826 = scalar_lea.vmem %s13, %s825
      %p827 = scmp.lt.s32.totalorder %s33, 1
      %s828 = scalar_select %p827, %s33, 1
      %s829 = smul.addr %s828, 8
      %s830 = smul.addr %s829, 4
      %s831 = scalar_lea.vmem %s14, %s830
      %p832 = scmp.lt.s32.totalorder %s33, 1
      %s833 = scalar_select %p832, %s33, 1
      %s834 = scalar_lea.vmem %s15, %s833
      %p835 = scmp.lt.s32.totalorder %s33, 1
      %s836 = scalar_select %p835, %s33, 1
      %s837 = scalar_lea.vmem %s16, %s836
      %p838 = scmp.lt.s32.totalorder %s33, 1
      %s839 = scalar_select %p838, %s33, 1
      %s840 = scalar_lea.vmem %s17, %s839
      %p842 = scmp.eq.s32.totalorder %s33, 0
      // Predicated region
      $region109: #{electra_forward.1} parent=107 // pred_check
        %p843 = pneg %p842
      $region110: #{electra_forward.1} parent=107 // pred_check_branch
        %845 = sbr.rel (%p843) target = $region112
      $region111: #{electra_forward.1} parent=107 // pred_region
        %v846 = vld [vmem:[%s0] sm:$0xff]
        %v847 = vld [vmem:[%s0 + $0x8] sm:$0xff]
        %v848 = vld [vmem:[%s2] sm:$0x1]
        %v849 = vld [vmem:[%s3] sm:$0x1]
        %vm850 = vcmask 130048
        %v851 = vsel %vm850, %v846, 0.0
        %852 = vadd.xlane.f32.xlu0 %v851
        %v853 = vpop.xlane.xlu0 %852
        %v854 = vsel %vm850, %v847, 0.0
        %855 = vadd.xlane.f32.xlu0 %v854
        %v856 = vpop.xlane.xlu0 %855
        %v857 = vrcp.pop 16.0
        %v858 = vmul.f32 %v853, %v857
        %v859 = vmul.f32 %v856, %v857
        %v860 = vsub.f32 %v846, %v858
        %v861 = vsub.f32 %v847, %v859
        %v862 = vmul.f32 %v860, %v860
        %v863 = vmul.f32 %v861, %v861
        %v864 = vsel %vm850, %v862, 0.0
        %865 = vadd.xlane.f32.xlu0 %v864
        %v866 = vpop.xlane.xlu0 %865
        %v867 = vsel %vm850, %v863, 0.0
        %868 = vadd.xlane.f32.xlu0 %v867
        %v869 = vpop.xlane.xlu0 %868
        %v870 = vmul.f32 %v866, %v857
        %v871 = vmul.f32 %v869, %v857
        %v872 = vadd.f32 %v870, 1e-12
        %v873 = vadd.f32 %v871, 1e-12
        %v874 = vrsqrt.pop %v872
        %v875 = vrsqrt.pop %v873
        %v876 = vmul.f32 %v860, %v874
        %v877 = vmul.f32 %v861, %v875
        %v879 = vlaneseq
        %v880 = vshrl.u32 %v879, 7
        %v881 = vsub.s32 0, %v880
        %v882 = vrot.slane %v848, %v881
        %v884 = vmul.f32 %v876, %v882
        %v885 = vmul.f32 %v877, %v882
        %v887 = vlaneseq
        %v888 = vshrl.u32 %v887, 7
        %v889 = vsub.s32 0, %v888
        %v890 = vrot.slane %v849, %v889
        %v892 = vadd.f32 %v884, %v890
        %v893 = vadd.f32 %v885, %v890
        %v894 = vld [vmem:[%s4] sm:$0xf]
        %v895 = vld [vmem:[%s4 + $0x4] sm:$0xf]
        %v896 = vpack.c.bf16 %v893, %v892
        %v897 = vld [vmem:[%s5] sm:$0x1]
        %v899 = vlaneseq
        %v900 = vshrl.u32 %v899, 7
        %v901 = vsub.s32 0, %v900
        %v902 = vrot.slane %v897, %v901
        %v906 = vunpack.c.l.b16 %v894
        %v907 = vunpack.c.l.b16 %v895
        %v908 = vpack.c.b16 %v907, %v906
        %v911 = vsel %vm850, %v896, 0
        %913 = vmatprep.subr.bf16.mxu0 0
        %914 = vmatpush1.bf16.msra.mxu0 %v908
        %915 = vmatprep.subr.bf16.mxu0 0
        %916 = vmatpush1.bf16.msra.mxu0 0
        %917 = vmatprep.subr.bf16.mxu0 0
        %918 = vmatpush1.bf16.msra.mxu0 0
        %919 = vmatprep.subr.bf16.mxu0 0
        %920 = vmatpush1.bf16.msra.mxu0 0
        %921 = vmatprep.subr.bf16.mxu0 0
        %922 = vmatpush1.bf16.msra.mxu0 0
        %923 = vmatprep.subr.bf16.mxu0 0
        %924 = vmatpush1.bf16.msra.mxu0 0
        %925 = vmatprep.subr.bf16.mxu0 0
        %926 = vmatpush1.bf16.msra.mxu0 0
        %927 = vmatprep.subr.bf16.mxu0 0
        %928 = vmatpush1.bf16.msra.mxu0 0
        %929 = vmatprep.subr.bf16.mxu0 0
        %930 = vmatpush1.bf16.msra.mxu0 0
        %931 = vmatprep.subr.bf16.mxu0 0
        %932 = vmatpush1.bf16.msra.mxu0 0
        %933 = vmatprep.subr.bf16.mxu0 0
        %934 = vmatpush1.bf16.msra.mxu0 0
        %935 = vmatprep.subr.bf16.mxu0 0
        %936 = vmatpush1.bf16.msra.mxu0 0
        %937 = vmatprep.subr.bf16.mxu0 0
        %938 = vmatpush1.bf16.msra.mxu0 0
        %939 = vmatprep.subr.bf16.mxu0 0
        %940 = vmatpush1.bf16.msra.mxu0 0
        %941 = vmatprep.subr.bf16.mxu0 0
        %942 = vmatpush1.bf16.msra.mxu0 0
        %943 = vmatprep.subr.bf16.mxu0 0
        %944 = vmatpush1.bf16.msra.mxu0 0
        %945 = vmatprep.mubr.bf16.mxu0 0
        %946 = vmatmul.mubr.bf16.gmra.mrb[0].mxu0 %v911
        %v947 = vpop.f32.mrb[0].mxu0
        %v948 = vadd.f32 %v902, %v947
        %v949 = vpop.f32.mrb[0].mxu0
        %v950 = vpop.f32.mrb[0].mxu0
        %v951 = vadd.f32 %v902, %v950
        %v952 = vpop.f32.mrb[0].mxu0
        %953 = vdwg.mxu0
        %vm954 = vcmask 261120
        %955 = vst.msk [vmem:[#allocation2] sm:$0xff] %vm954, %v948
        %956 = vst.msk [vmem:[#allocation2 + $0x8] sm:$0xff] %vm954, %v951
      $region112: #{electra_forward.1} parent=107 // pred_fallthru
        _
      %v957 = vld [vmem:[#allocation2] sm:$0xff]
      %v958 = vld [vmem:[#allocation2 + $0x8] sm:$0xff]
      %v959 = vld [vmem:[%s801] sm:$0xf]
      %v960 = vld [vmem:[%s801 + $0x4] sm:$0xf]
      %v961 = vld [vmem:[%s801 + $0x8] sm:$0xf]
      %v962 = vld [vmem:[%s801 + $0xc] sm:$0xf]
      %v963 = vpack.c.bf16 %v958, %v957
      %v964 = vld [vmem:[%s804] sm:$0x1]
      %v966 = vlaneseq
      %v967 = vshrl.u32 %v966, 7
      %v968 = vsub.s32 0, %v967
      %v969 = vrot.slane %v964, %v968
      %v975 = vunpack.c.l.b16 %v959
      %v976 = vunpack.c.l.b16 %v960
      %v977 = vunpack.c.l.b16 %v961
      %v978 = vunpack.c.l.b16 %v962
      %v979 = vpack.c.b16 %v976, %v975
      %v980 = vpack.c.b16 %v978, %v977
      %vm983 = vcmask 261120
      %v985 = vsel %vm983, %v963, 0
      %987 = vmatprep.subr.bf16.mxu0 0
      %988 = vmatpush1.bf16.msra.mxu0 %v979
      %989 = vmatprep.subr.bf16.mxu0 0
      %990 = vmatpush1.bf16.msra.mxu0 %v980
      %991 = vmatprep.subr.bf16.mxu0 0
      %992 = vmatpush1.bf16.msra.mxu0 0
      %993 = vmatprep.subr.bf16.mxu0 0
      %994 = vmatpush1.bf16.msra.mxu0 0
      %995 = vmatprep.subr.bf16.mxu0 0
      %996 = vmatpush1.bf16.msra.mxu0 0
      %997 = vmatprep.subr.bf16.mxu0 0
      %998 = vmatpush1.bf16.msra.mxu0 0
      %999 = vmatprep.subr.bf16.mxu0 0
      %1000 = vmatpush1.bf16.msra.mxu0 0
      %1001 = vmatprep.subr.bf16.mxu0 0
      %1002 = vmatpush1.bf16.msra.mxu0 0
      %1003 = vmatprep.subr.bf16.mxu0 0
      %1004 = vmatpush1.bf16.msra.mxu0 0
      %1005 = vmatprep.subr.bf16.mxu0 0
      %1006 = vmatpush1.bf16.msra.mxu0 0
      %1007 = vmatprep.subr.bf16.mxu0 0
      %1008 = vmatpush1.bf16.msra.mxu0 0
      %1009 = vmatprep.subr.bf16.mxu0 0
      %1010 = vmatpush1.bf16.msra.mxu0 0
      %1011 = vmatprep.subr.bf16.mxu0 0
      %1012 = vmatpush1.bf16.msra.mxu0 0
      %1013 = vmatprep.subr.bf16.mxu0 0
      %1014 = vmatpush1.bf16.msra.mxu0 0
      %1015 = vmatprep.subr.bf16.mxu0 0
      %1016 = vmatpush1.bf16.msra.mxu0 0
      %1017 = vmatprep.subr.bf16.mxu0 0
      %1018 = vmatpush1.bf16.msra.mxu0 0
      %1019 = vmatprep.mubr.bf16.mxu0 0
      %1020 = vmatmul.mubr.bf16.gmra.mrb[0].mxu0 %v985
      %v1021 = vpop.f32.mrb[0].mxu0
      %v1022 = vadd.f32 %v969, %v1021
      %v1023 = vpop.f32.mrb[0].mxu0
      %v1024 = vpop.f32.mrb[0].mxu0
      %v1025 = vadd.f32 %v969, %v1024
      %v1026 = vpop.f32.mrb[0].mxu0
      %1027 = vdwg.mxu0
      %v1028 = vld [vmem:[%s1] sm:$0xff]
      %v1029 = vld [vmem:[%s1 + $0x8] sm:$0xff]
      %v1030 = vmul.f32 %v1022, 0.35355338
      %v1031 = vmul.f32 %v1025, 0.35355338
      %v1032 = vpack.c.bf16 %v1031, %v1030
      %v1033 = vpack.c.bf16 %v1025, %v1022
      %1035 = vrot.lane.b32.xlu0 %v1033, 96
      %v1036 = vpop.permute.xlu0 %1035
      %vm1037 = vcmask 64512
      %v1039 = vsel %vm1037, %v1032, 0
      %v1042 = vsel %vm1037, %v1036, 0
      %1044 = vmatprep.subr.bf16.mxu0 0
      %1045 = vmatpush1.bf16.xpose.msra.mxu0 %v1042
      %1046 = vmatprep.subr.bf16.mxu0 0
      %1047 = vmatpush1.bf16.xpose.msra.mxu0 0
      %1048 = vmatprep.subr.bf16.mxu0 0
      %1049 = vmatpush1.bf16.xpose.msra.mxu0 0
      %1050 = vmatprep.subr.bf16.mxu0 0
      %1051 = vmatpush1.bf16.xpose.msra.mxu0 0
      %1052 = vmatprep.subr.bf16.mxu0 0
      %1053 = vmatpush1.bf16.xpose.msra.mxu0 0
      %1054 = vmatprep.subr.bf16.mxu0 0
      %1055 = vmatpush1.bf16.xpose.msra.mxu0 0
      %1056 = vmatprep.subr.bf16.mxu0 0
      %1057 = vmatpush1.bf16.xpose.msra.mxu0 0
      %1058 = vmatprep.subr.bf16.mxu0 0
      %1059 = vmatpush1.bf16.xpose.msra.mxu0 0
      %1060 = vmatprep.subr.bf16.mxu0 0
      %1061 = vmatpush1.bf16.xpose.msra.mxu0 0
      %1062 = vmatprep.subr.bf16.mxu0 0
      %1063 = vmatpush1.bf16.xpose.msra.mxu0 0
      %1064 = vmatprep.subr.bf16.mxu0 0
      %1065 = vmatpush1.bf16.xpose.msra.mxu0 0
      %1066 = vmatprep.subr.bf16.mxu0 0
      %1067 = vmatpush1.bf16.xpose.msra.mxu0 0
      %1068 = vmatprep.subr.bf16.mxu0 0
      %1069 = vmatpush1.bf16.xpose.msra.mxu0 0
      %1070 = vmatprep.subr.bf16.mxu0 0
      %1071 = vmatpush1.bf16.xpose.msra.mxu0 0
      %1072 = vmatprep.subr.bf16.mxu0 0
      %1073 = vmatpush1.bf16.xpose.msra.mxu0 0
      %1074 = vmatprep.subr.bf16.mxu0 0
      %1075 = vmatpush1.bf16.xpose.msra.mxu0 0
      %1076 = vmatprep.mubr.bf16.mxu0 0
      %1077 = vmatmul.mubr.bf16.gmra.mrb[0].mxu0 %v1039
      %v1078 = vpop.f32.mrb[0].mxu0
      %v1079 = vadd.f32 %v1028, %v1078
      %v1080 = vpop.f32.mrb[0].mxu0
      %v1081 = vpop.f32.mrb[0].mxu0
      %v1082 = vadd.f32 %v1029, %v1081
      %v1083 = vpop.f32.mrb[0].mxu0
      %1084 = vdwg.mxu0
      %vm1085 = vcmask 130048
      %v1086 = vsel %vm1085, %v1079, -inf
      %1087 = vmax.xlane.f32.xlu0 %v1086
      %v1088 = vpop.xlane.xlu0 %1087
      %v1089 = vsel %vm1085, %v1082, -inf
      %1090 = vmax.xlane.f32.xlu0 %v1089
      %v1091 = vpop.xlane.xlu0 %1090
      %v1092 = vsub.f32 %v1079, %v1088
      %v1093 = vsub.f32 %v1082, %v1091
      %v1094 = vmul.f32 %v1092, 1.442695
      %v1095 = vpow.pop %v1094
      %v1096 = vmul.f32 %v1093, 1.442695
      %v1097 = vpow.pop %v1096
      %v1098 = vsel %vm1085, %v1095, 0.0
      %1099 = vadd.xlane.f32.xlu0 %v1098
      %v1100 = vpop.xlane.xlu0 %1099
      %v1101 = vsel %vm1085, %v1097, 0.0
      %1102 = vadd.xlane.f32.xlu0 %v1101
      %v1103 = vpop.xlane.xlu0 %1102
      %v1104 = vrcp.pop %v1100
      %v1105 = vrcp.pop %v1103
      %v1106 = vmul.f32 %v1095, %v1104
      %v1107 = vmul.f32 %v1097, %v1105
      %v1108 = vpack.c.bf16 %v1107, %v1106
      %1109 = vrot.lane.b32.xlu0 %v1033, 64
      %v1110 = vpop.permute.xlu0 %1109
      %v1113 = vsel %vm1085, %v1108, 0
      %1115 = vmatprep.subr.bf16.mxu0 0
      %1116 = vmatpush1.bf16.msra.mxu0 %v1110
      %1117 = vmatprep.subr.bf16.mxu0 0
      %1118 = vmatpush1.bf16.msra.mxu0 0
      %1119 = vmatprep.subr.bf16.mxu0 0
      %1120 = vmatpush1.bf16.msra.mxu0 0
      %1121 = vmatprep.subr.bf16.mxu0 0
      %1122 = vmatpush1.bf16.msra.mxu0 0
      %1123 = vmatprep.subr.bf16.mxu0 0
      %1124 = vmatpush1.bf16.msra.mxu0 0
      %1125 = vmatprep.subr.bf16.mxu0 0
      %1126 = vmatpush1.bf16.msra.mxu0 0
      %1127 = vmatprep.subr.bf16.mxu0 0
      %1128 = vmatpush1.bf16.msra.mxu0 0
      %1129 = vmatprep.subr.bf16.mxu0 0
      %1130 = vmatpush1.bf16.msra.mxu0 0
      %1131 = vmatprep.subr.bf16.mxu0 0
      %1132 = vmatpush1.bf16.msra.mxu0 0
      %1133 = vmatprep.subr.bf16.mxu0 0
      %1134 = vmatpush1.bf16.msra.mxu0 0
      %1135 = vmatprep.subr.bf16.mxu0 0
      %1136 = vmatpush1.bf16.msra.mxu0 0
      %1137 = vmatprep.subr.bf16.mxu0 0
      %1138 = vmatpush1.bf16.msra.mxu0 0
      %1139 = vmatprep.subr.bf16.mxu0 0
      %1140 = vmatpush1.bf16.msra.mxu0 0
      %1141 = vmatprep.subr.bf16.mxu0 0
      %1142 = vmatpush1.bf16.msra.mxu0 0
      %1143 = vmatprep.subr.bf16.mxu0 0
      %1144 = vmatpush1.bf16.msra.mxu0 0
      %1145 = vmatprep.subr.bf16.mxu0 0
      %1146 = vmatpush1.bf16.msra.mxu0 0
      %1147 = vmatprep.mubr.bf16.mxu0 0
      %1148 = vmatmul.mubr.bf16.gmra.mrb[0].mxu0 %v1113
      %v1149 = vpop.f32.mrb[0].mxu0
      %v1150 = vadd.f32 0.0, %v1149
      %v1151 = vpop.f32.mrb[0].mxu0
      %v1152 = vpop.f32.mrb[0].mxu0
      %v1153 = vadd.f32 0.0, %v1152
      %v1154 = vpop.f32.mrb[0].mxu0
      %1155 = vdwg.mxu0
      %1157 = vrot.lane.b32.xlu0 %v1032, 120
      %v1158 = vpop.permute.xlu0 %1157
      %1159 = vrot.lane.b32.xlu0 %v1033, 88
      %v1160 = vpop.permute.xlu0 %1159
      %v1162 = vsel %vm1037, %v1158, 0
      %v1165 = vsel %vm1037, %v1160, 0
      %1167 = vmatprep.subr.bf16.mxu0 0
      %1168 = vmatpush1.bf16.xpose.msra.mxu0 %v1165
      %1169 = vmatprep.subr.bf16.mxu0 0
      %1170 = vmatpush1.bf16.xpose.msra.mxu0 0
      %1171 = vmatprep.subr.bf16.mxu0 0
      %1172 = vmatpush1.bf16.xpose.msra.mxu0 0
      %1173 = vmatprep.subr.bf16.mxu0 0
      %1174 = vmatpush1.bf16.xpose.msra.mxu0 0
      %1175 = vmatprep.subr.bf16.mxu0 0
      %1176 = vmatpush1.bf16.xpose.msra.mxu0 0
      %1177 = vmatprep.subr.bf16.mxu0 0
      %1178 = vmatpush1.bf16.xpose.msra.mxu0 0
      %1179 = vmatprep.subr.bf16.mxu0 0
      %1180 = vmatpush1.bf16.xpose.msra.mxu0 0
      %1181 = vmatprep.subr.bf16.mxu0 0
      %1182 = vmatpush1.bf16.xpose.msra.mxu0 0
      %1183 = vmatprep.subr.bf16.mxu0 0
      %1184 = vmatpush1.bf16.xpose.msra.mxu0 0
      %1185 = vmatprep.subr.bf16.mxu0 0
      %1186 = vmatpush1.bf16.xpose.msra.mxu0 0
      %1187 = vmatprep.subr.bf16.mxu0 0
      %1188 = vmatpush1.bf16.xpose.msra.mxu0 0
      %1189 = vmatprep.subr.bf16.mxu0 0
      %1190 = vmatpush1.bf16.xpose.msra.mxu0 0
      %1191 = vmatprep.subr.bf16.mxu0 0
      %1192 = vmatpush1.bf16.xpose.msra.mxu0 0
      %1193 = vmatprep.subr.bf16.mxu0 0
      %1194 = vmatpush1.bf16.xpose.msra.mxu0 0
      %1195 = vmatprep.subr.bf16.mxu0 0
      %1196 = vmatpush1.bf16.xpose.msra.mxu0 0
      %1197 = vmatprep.subr.bf16.mxu0 0
      %1198 = vmatpush1.bf16.xpose.msra.mxu0 0
      %1199 = vmatprep.mubr.bf16.mxu0 0
      %1200 = vmatmul.mubr.bf16.gmra.mrb[0].mxu0 %v1162
      %v1201 = vpop.f32.mrb[0].mxu0
      %v1202 = vadd.f32 %v1028, %v1201
      %v1203 = vpop.f32.mrb[0].mxu0
      %v1204 = vpop.f32.mrb[0].mxu0
      %v1205 = vadd.f32 %v1029, %v1204
      %v1206 = vpop.f32.mrb[0].mxu0
      %1207 = vdwg.mxu0
      %v1208 = vsel %vm1085, %v1202, -inf
      %1209 = vmax.xlane.f32.xlu0 %v1208
      %v1210 = vpop.xlane.xlu0 %1209
      %v1211 = vsel %vm1085, %v1205, -inf
      %1212 = vmax.xlane.f32.xlu0 %v1211
      %v1213 = vpop.xlane.xlu0 %1212
      %v1214 = vsub.f32 %v1202, %v1210
      %v1215 = vsub.f32 %v1205, %v1213
      %v1216 = vmul.f32 %v1214, 1.442695
      %v1217 = vpow.pop %v1216
      %v1218 = vmul.f32 %v1215, 1.442695
      %v1219 = vpow.pop %v1218
      %v1220 = vsel %vm1085, %v1217, 0.0
      %1221 = vadd.xlane.f32.xlu0 %v1220
      %v1222 = vpop.xlane.xlu0 %1221
      %v1223 = vsel %vm1085, %v1219, 0.0
      %1224 = vadd.xlane.f32.xlu0 %v1223
      %v1225 = vpop.xlane.xlu0 %1224
      %v1226 = vrcp.pop %v1222
      %v1227 = vrcp.pop %v1225
      %v1228 = vmul.f32 %v1217, %v1226
      %v1229 = vmul.f32 %v1219, %v1227
      %v1230 = vpack.c.bf16 %v1229, %v1228
      %1231 = vrot.lane.b32.xlu0 %v1033, 56
      %v1232 = vpop.permute.xlu0 %1231
      %v1235 = vsel %vm1085, %v1230, 0
      %1237 = vmatprep.subr.bf16.mxu0 0
      %1238 = vmatpush1.bf16.msra.mxu0 %v1232
      %1239 = vmatprep.subr.bf16.mxu0 0
      %1240 = vmatpush1.bf16.msra.mxu0 0
      %1241 = vmatprep.subr.bf16.mxu0 0
      %1242 = vmatpush1.bf16.msra.mxu0 0
      %1243 = vmatprep.subr.bf16.mxu0 0
      %1244 = vmatpush1.bf16.msra.mxu0 0
      %1245 = vmatprep.subr.bf16.mxu0 0
      %1246 = vmatpush1.bf16.msra.mxu0 0
      %1247 = vmatprep.subr.bf16.mxu0 0
      %1248 = vmatpush1.bf16.msra.mxu0 0
      %1249 = vmatprep.subr.bf16.mxu0 0
      %1250 = vmatpush1.bf16.msra.mxu0 0
      %1251 = vmatprep.subr.bf16.mxu0 0
      %1252 = vmatpush1.bf16.msra.mxu0 0
      %1253 = vmatprep.subr.bf16.mxu0 0
      %1254 = vmatpush1.bf16.msra.mxu0 0
      %1255 = vmatprep.subr.bf16.mxu0 0
      %1256 = vmatpush1.bf16.msra.mxu0 0
      %1257 = vmatprep.subr.bf16.mxu0 0
      %1258 = vmatpush1.bf16.msra.mxu0 0
      %1259 = vmatprep.subr.bf16.mxu0 0
      %1260 = vmatpush1.bf16.msra.mxu0 0
      %1261 = vmatprep.subr.bf16.mxu0 0
      %1262 = vmatpush1.bf16.msra.mxu0 0
      %1263 = vmatprep.subr.bf16.mxu0 0
      %1264 = vmatpush1.bf16.msra.mxu0 0
      %1265 = vmatprep.subr.bf16.mxu0 0
      %1266 = vmatpush1.bf16.msra.mxu0 0
      %1267 = vmatprep.subr.bf16.mxu0 0
      %1268 = vmatpush1.bf16.msra.mxu0 0
      %1269 = vmatprep.mubr.bf16.mxu0 0
      %1270 = vmatmul.mubr.bf16.gmra.mrb[0].mxu0 %v1235
      %v1271 = vpop.f32.mrb[0].mxu0
      %v1272 = vadd.f32 0.0, %v1271
      %v1273 = vpop.f32.mrb[0].mxu0
      %v1274 = vpop.f32.mrb[0].mxu0
      %v1275 = vadd.f32 0.0, %v1274
      %v1276 = vpop.f32.mrb[0].mxu0
      %1277 = vdwg.mxu0
      %1278 = vrot.lane.b32.xlu0 %v1032, 112
      %v1279 = vpop.permute.xlu0 %1278
      %1280 = vrot.lane.b32.xlu0 %v1033, 80
      %v1281 = vpop.permute.xlu0 %1280
      %v1283 = vsel %vm1037, %v1279, 0
      %v1286 = vsel %vm1037, %v1281, 0
      %1288 = vmatprep.subr.bf16.mxu0 0
      %1289 = vmatpush1.bf16.xpose.msra.mxu0 %v1286
      %1290 = vmatprep.subr.bf16.mxu0 0
      %1291 = vmatpush1.bf16.xpose.msra.mxu0 0
      %1292 = vmatprep.subr.bf16.mxu0 0
      %1293 = vmatpush1.bf16.xpose.msra.mxu0 0
      %1294 = vmatprep.subr.bf16.mxu0 0
      %1295 = vmatpush1.bf16.xpose.msra.mxu0 0
      %1296 = vmatprep.subr.bf16.mxu0 0
      %1297 = vmatpush1.bf16.xpose.msra.mxu0 0
      %1298 = vmatprep.subr.bf16.mxu0 0
      %1299 = vmatpush1.bf16.xpose.msra.mxu0 0
      %1300 = vmatprep.subr.bf16.mxu0 0
      %1301 = vmatpush1.bf16.xpose.msra.mxu0 0
      %1302 = vmatprep.subr.bf16.mxu0 0
      %1303 = vmatpush1.bf16.xpose.msra.mxu0 0
      %1304 = vmatprep.subr.bf16.mxu0 0
      %1305 = vmatpush1.bf16.xpose.msra.mxu0 0
      %1306 = vmatprep.subr.bf16.mxu0 0
      %1307 = vmatpush1.bf16.xpose.msra.mxu0 0
      %1308 = vmatprep.subr.bf16.mxu0 0
      %1309 = vmatpush1.bf16.xpose.msra.mxu0 0
      %1310 = vmatprep.subr.bf16.mxu0 0
      %1311 = vmatpush1.bf16.xpose.msra.mxu0 0
      %1312 = vmatprep.subr.bf16.mxu0 0
      %1313 = vmatpush1.bf16.xpose.msra.mxu0 0
      %1314 = vmatprep.subr.bf16.mxu0 0
      %1315 = vmatpush1.bf16.xpose.msra.mxu0 0
      %1316 = vmatprep.subr.bf16.mxu0 0
      %1317 = vmatpush1.bf16.xpose.msra.mxu0 0
      %1318 = vmatprep.subr.bf16.mxu0 0
      %1319 = vmatpush1.bf16.xpose.msra.mxu0 0
      %1320 = vmatprep.mubr.bf16.mxu0 0
      %1321 = vmatmul.mubr.bf16.gmra.mrb[0].mxu0 %v1283
      %v1322 = vpop.f32.mrb[0].mxu0
      %v1323 = vadd.f32 %v1028, %v1322
      %v1324 = vpop.f32.mrb[0].mxu0
      %v1325 = vpop.f32.mrb[0].mxu0
      %v1326 = vadd.f32 %v1029, %v1325
      %v1327 = vpop.f32.mrb[0].mxu0
      %1328 = vdwg.mxu0
      %v1329 = vsel %vm1085, %v1323, -inf
      %1330 = vmax.xlane.f32.xlu0 %v1329
      %v1331 = vpop.xlane.xlu0 %1330
      %v1332 = vsel %vm1085, %v1326, -inf
      %1333 = vmax.xlane.f32.xlu0 %v1332
      %v1334 = vpop.xlane.xlu0 %1333
      %v1335 = vsub.f32 %v1323, %v1331
      %v1336 = vsub.f32 %v1326, %v1334
      %v1337 = vmul.f32 %v1335, 1.442695
      %v1338 = vpow.pop %v1337
      %v1339 = vmul.f32 %v1336, 1.442695
      %v1340 = vpow.pop %v1339
      %v1341 = vsel %vm1085, %v1338, 0.0
      %1342 = vadd.xlane.f32.xlu0 %v1341
      %v1343 = vpop.xlane.xlu0 %1342
      %v1344 = vsel %vm1085, %v1340, 0.0
      %1345 = vadd.xlane.f32.xlu0 %v1344
      %v1346 = vpop.xlane.xlu0 %1345
      %v1347 = vrcp.pop %v1343
      %v1348 = vrcp.pop %v1346
      %v1349 = vmul.f32 %v1338, %v1347
      %v1350 = vmul.f32 %v1340, %v1348
      %v1351 = vpack.c.bf16 %v1350, %v1349
      %1352 = vrot.lane.b32.xlu0 %v1033, 48
      %v1353 = vpop.permute.xlu0 %1352
      %v1356 = vsel %vm1085, %v1351, 0
      %1358 = vmatprep.subr.bf16.mxu0 0
      %1359 = vmatpush1.bf16.msra.mxu0 %v1353
      %1360 = vmatprep.subr.bf16.mxu0 0
      %1361 = vmatpush1.bf16.msra.mxu0 0
      %1362 = vmatprep.subr.bf16.mxu0 0
      %1363 = vmatpush1.bf16.msra.mxu0 0
      %1364 = vmatprep.subr.bf16.mxu0 0
      %1365 = vmatpush1.bf16.msra.mxu0 0
      %1366 = vmatprep.subr.bf16.mxu0 0
      %1367 = vmatpush1.bf16.msra.mxu0 0
      %1368 = vmatprep.subr.bf16.mxu0 0
      %1369 = vmatpush1.bf16.msra.mxu0 0
      %1370 = vmatprep.subr.bf16.mxu0 0
      %1371 = vmatpush1.bf16.msra.mxu0 0
      %1372 = vmatprep.subr.bf16.mxu0 0
      %1373 = vmatpush1.bf16.msra.mxu0 0
      %1374 = vmatprep.subr.bf16.mxu0 0
      %1375 = vmatpush1.bf16.msra.mxu0 0
      %1376 = vmatprep.subr.bf16.mxu0 0
      %1377 = vmatpush1.bf16.msra.mxu0 0
      %1378 = vmatprep.subr.bf16.mxu0 0
      %1379 = vmatpush1.bf16.msra.mxu0 0
      %1380 = vmatprep.subr.bf16.mxu0 0
      %1381 = vmatpush1.bf16.msra.mxu0 0
      %1382 = vmatprep.subr.bf16.mxu0 0
      %1383 = vmatpush1.bf16.msra.mxu0 0
      %1384 = vmatprep.subr.bf16.mxu0 0
      %1385 = vmatpush1.bf16.msra.mxu0 0
      %1386 = vmatprep.subr.bf16.mxu0 0
      %1387 = vmatpush1.bf16.msra.mxu0 0
      %1388 = vmatprep.subr.bf16.mxu0 0
      %1389 = vmatpush1.bf16.msra.mxu0 0
      %1390 = vmatprep.mubr.bf16.mxu0 0
      %1391 = vmatmul.mubr.bf16.gmra.mrb[0].mxu0 %v1356
      %v1392 = vpop.f32.mrb[0].mxu0
      %v1393 = vadd.f32 0.0, %v1392
      %v1394 = vpop.f32.mrb[0].mxu0
      %v1395 = vpop.f32.mrb[0].mxu0
      %v1396 = vadd.f32 0.0, %v1395
      %v1397 = vpop.f32.mrb[0].mxu0
      %1398 = vdwg.mxu0
      %1399 = vrot.lane.b32.xlu0 %v1032, 104
      %v1400 = vpop.permute.xlu0 %1399
      %1401 = vrot.lane.b32.xlu0 %v1033, 72
      %v1402 = vpop.permute.xlu0 %1401
      %v1404 = vsel %vm1037, %v1400, 0
      %v1407 = vsel %vm1037, %v1402, 0
      %1409 = vmatprep.subr.bf16.mxu0 0
      %1410 = vmatpush1.bf16.xpose.msra.mxu0 %v1407
      %1411 = vmatprep.subr.bf16.mxu0 0
      %1412 = vmatpush1.bf16.xpose.msra.mxu0 0
      %1413 = vmatprep.subr.bf16.mxu0 0
      %1414 = vmatpush1.bf16.xpose.msra.mxu0 0
      %1415 = vmatprep.subr.bf16.mxu0 0
      %1416 = vmatpush1.bf16.xpose.msra.mxu0 0
      %1417 = vmatprep.subr.bf16.mxu0 0
      %1418 = vmatpush1.bf16.xpose.msra.mxu0 0
      %1419 = vmatprep.subr.bf16.mxu0 0
      %1420 = vmatpush1.bf16.xpose.msra.mxu0 0
      %1421 = vmatprep.subr.bf16.mxu0 0
      %1422 = vmatpush1.bf16.xpose.msra.mxu0 0
      %1423 = vmatprep.subr.bf16.mxu0 0
      %1424 = vmatpush1.bf16.xpose.msra.mxu0 0
      %1425 = vmatprep.subr.bf16.mxu0 0
      %1426 = vmatpush1.bf16.xpose.msra.mxu0 0
      %1427 = vmatprep.subr.bf16.mxu0 0
      %1428 = vmatpush1.bf16.xpose.msra.mxu0 0
      %1429 = vmatprep.subr.bf16.mxu0 0
      %1430 = vmatpush1.bf16.xpose.msra.mxu0 0
      %1431 = vmatprep.subr.bf16.mxu0 0
      %1432 = vmatpush1.bf16.xpose.msra.mxu0 0
      %1433 = vmatprep.subr.bf16.mxu0 0
      %1434 = vmatpush1.bf16.xpose.msra.mxu0 0
      %1435 = vmatprep.subr.bf16.mxu0 0
      %1436 = vmatpush1.bf16.xpose.msra.mxu0 0
      %1437 = vmatprep.subr.bf16.mxu0 0
      %1438 = vmatpush1.bf16.xpose.msra.mxu0 0
      %1439 = vmatprep.subr.bf16.mxu0 0
      %1440 = vmatpush1.bf16.xpose.msra.mxu0 0
      %1441 = vmatprep.mubr.bf16.mxu0 0
      %1442 = vmatmul.mubr.bf16.gmra.mrb[0].mxu0 %v1404
      %v1443 = vpop.f32.mrb[0].mxu0
      %v1444 = vadd.f32 %v1028, %v1443
      %v1445 = vpop.f32.mrb[0].mxu0
      %v1446 = vpop.f32.mrb[0].mxu0
      %v1447 = vadd.f32 %v1029, %v1446
      %v1448 = vpop.f32.mrb[0].mxu0
      %1449 = vdwg.mxu0
      %v1450 = vsel %vm1085, %v1444, -inf
      %1451 = vmax.xlane.f32.xlu0 %v1450
      %v1452 = vpop.xlane.xlu0 %1451
      %v1453 = vsel %vm1085, %v1447, -inf
      %1454 = vmax.xlane.f32.xlu0 %v1453
      %v1455 = vpop.xlane.xlu0 %1454
      %v1456 = vsub.f32 %v1444, %v1452
      %v1457 = vsub.f32 %v1447, %v1455
      %v1458 = vmul.f32 %v1456, 1.442695
      %v1459 = vpow.pop %v1458
      %v1460 = vmul.f32 %v1457, 1.442695
      %v1461 = vpow.pop %v1460
      %v1462 = vsel %vm1085, %v1459, 0.0
      %1463 = vadd.xlane.f32.xlu0 %v1462
      %v1464 = vpop.xlane.xlu0 %1463
      %v1465 = vsel %vm1085, %v1461, 0.0
      %1466 = vadd.xlane.f32.xlu0 %v1465
      %v1467 = vpop.xlane.xlu0 %1466
      %v1468 = vrcp.pop %v1464
      %v1469 = vrcp.pop %v1467
      %v1470 = vmul.f32 %v1459, %v1468
      %v1471 = vmul.f32 %v1461, %v1469
      %v1472 = vpack.c.bf16 %v1471, %v1470
      %1473 = vrot.lane.b32.xlu0 %v1033, 40
      %v1474 = vpop.permute.xlu0 %1473
      %v1477 = vsel %vm1085, %v1472, 0
      %1479 = vmatprep.subr.bf16.mxu0 0
      %1480 = vmatpush1.bf16.msra.mxu0 %v1474
      %1481 = vmatprep.subr.bf16.mxu0 0
      %1482 = vmatpush1.bf16.msra.mxu0 0
      %1483 = vmatprep.subr.bf16.mxu0 0
      %1484 = vmatpush1.bf16.msra.mxu0 0
      %1485 = vmatprep.subr.bf16.mxu0 0
      %1486 = vmatpush1.bf16.msra.mxu0 0
      %1487 = vmatprep.subr.bf16.mxu0 0
      %1488 = vmatpush1.bf16.msra.mxu0 0
      %1489 = vmatprep.subr.bf16.mxu0 0
      %1490 = vmatpush1.bf16.msra.mxu0 0
      %1491 = vmatprep.subr.bf16.mxu0 0
      %1492 = vmatpush1.bf16.msra.mxu0 0
      %1493 = vmatprep.subr.bf16.mxu0 0
      %1494 = vmatpush1.bf16.msra.mxu0 0
      %1495 = vmatprep.subr.bf16.mxu0 0
      %1496 = vmatpush1.bf16.msra.mxu0 0
      %1497 = vmatprep.subr.bf16.mxu0 0
      %1498 = vmatpush1.bf16.msra.mxu0 0
      %1499 = vmatprep.subr.bf16.mxu0 0
      %1500 = vmatpush1.bf16.msra.mxu0 0
      %1501 = vmatprep.subr.bf16.mxu0 0
      %1502 = vmatpush1.bf16.msra.mxu0 0
      %1503 = vmatprep.subr.bf16.mxu0 0
      %1504 = vmatpush1.bf16.msra.mxu0 0
      %1505 = vmatprep.subr.bf16.mxu0 0
      %1506 = vmatpush1.bf16.msra.mxu0 0
      %1507 = vmatprep.subr.bf16.mxu0 0
      %1508 = vmatpush1.bf16.msra.mxu0 0
      %1509 = vmatprep.subr.bf16.mxu0 0
      %1510 = vmatpush1.bf16.msra.mxu0 0
      %1511 = vmatprep.mubr.bf16.mxu0 0
      %1512 = vmatmul.mubr.bf16.gmra.mrb[0].mxu0 %v1477
      %v1513 = vpop.f32.mrb[0].mxu0
      %v1514 = vadd.f32 0.0, %v1513
      %v1515 = vpop.f32.mrb[0].mxu0
      %v1516 = vpop.f32.mrb[0].mxu0
      %v1517 = vadd.f32 0.0, %v1516
      %v1518 = vpop.f32.mrb[0].mxu0
      %1519 = vdwg.mxu0
      %1522 = vrot.lane.b32.xlu0 %v1272, 8
      %v1523 = vpop.permute.xlu0 %1522
      %1524 = vrot.lane.b32.xlu0 %v1275, 8
      %v1525 = vpop.permute.xlu0 %1524
      %1530 = vrot.lane.b32.xlu0 %v1393, 16
      %v1531 = vpop.permute.xlu0 %1530
      %1532 = vrot.lane.b32.xlu0 %v1396, 16
      %v1533 = vpop.permute.xlu0 %1532
      %1538 = vrot.lane.b32.xlu0 %v1514, 24
      %v1539 = vpop.permute.xlu0 %1538
      %1540 = vrot.lane.b32.xlu0 %v1517, 24
      %v1541 = vpop.permute.xlu0 %1540
      %v1544 = vsel %vm1037, %v1150, %v1523
      %v1545 = vsel %vm1037, %v1153, %v1525
      %v1546 = vsel %vm1085, %v1544, %v1531
      %v1547 = vsel %vm1085, %v1545, %v1533
      %vm1548 = vcmask 195584
      %v1549 = vsel %vm1548, %v1546, %v1539
      %v1550 = vsel %vm1548, %v1547, %v1541
      %v1551 = vld [vmem:[%s809] sm:$0xf]
      %v1552 = vld [vmem:[%s809 + $0x4] sm:$0xf]
      %v1553 = vld [vmem:[%s809 + $0x8] sm:$0xf]
      %v1554 = vld [vmem:[%s809 + $0xc] sm:$0xf]
      %v1555 = vpack.c.bf16 %v1550, %v1549
      %v1556 = vld [vmem:[%s812] sm:$0x1]
      %v1558 = vlaneseq
      %v1559 = vshrl.u32 %v1558, 7
      %v1560 = vsub.s32 0, %v1559
      %v1561 = vrot.slane %v1556, %v1560
      %v1567 = vunpack.c.l.b16 %v1551
      %v1568 = vunpack.c.l.b16 %v1552
      %v1569 = vunpack.c.l.b16 %v1553
      %v1570 = vunpack.c.l.b16 %v1554
      %v1571 = vpack.c.b16 %v1568, %v1567
      %v1572 = vpack.c.b16 %v1570, %v1569
      %v1576 = vsel %vm983, %v1555, 0
      %1578 = vmatprep.subr.bf16.mxu0 0
      %1579 = vmatpush1.bf16.msra.mxu0 %v1571
      %1580 = vmatprep.subr.bf16.mxu0 0
      %1581 = vmatpush1.bf16.msra.mxu0 %v1572
      %1582 = vmatprep.subr.bf16.mxu0 0
      %1583 = vmatpush1.bf16.msra.mxu0 0
      %1584 = vmatprep.subr.bf16.mxu0 0
      %1585 = vmatpush1.bf16.msra.mxu0 0
      %1586 = vmatprep.subr.bf16.mxu0 0
      %1587 = vmatpush1.bf16.msra.mxu0 0
      %1588 = vmatprep.subr.bf16.mxu0 0
      %1589 = vmatpush1.bf16.msra.mxu0 0
      %1590 = vmatprep.subr.bf16.mxu0 0
      %1591 = vmatpush1.bf16.msra.mxu0 0
      %1592 = vmatprep.subr.bf16.mxu0 0
      %1593 = vmatpush1.bf16.msra.mxu0 0
      %1594 = vmatprep.subr.bf16.mxu0 0
      %1595 = vmatpush1.bf16.msra.mxu0 0
      %1596 = vmatprep.subr.bf16.mxu0 0
      %1597 = vmatpush1.bf16.msra.mxu0 0
      %1598 = vmatprep.subr.bf16.mxu0 0
      %1599 = vmatpush1.bf16.msra.mxu0 0
      %1600 = vmatprep.subr.bf16.mxu0 0
      %1601 = vmatpush1.bf16.msra.mxu0 0
      %1602 = vmatprep.subr.bf16.mxu0 0
      %1603 = vmatpush1.bf16.msra.mxu0 0
      %1604 = vmatprep.subr.bf16.mxu0 0
      %1605 = vmatpush1.bf16.msra.mxu0 0
      %1606 = vmatprep.subr.bf16.mxu0 0
      %1607 = vmatpush1.bf16.msra.mxu0 0
      %1608 = vmatprep.subr.bf16.mxu0 0
      %1609 = vmatpush1.bf16.msra.mxu0 0
      %1610 = vmatprep.mubr.bf16.mxu0 0
      %1611 = vmatmul.mubr.bf16.gmra.mrb[0].mxu0 %v1576
      %v1612 = vpop.f32.mrb[0].mxu0
      %v1613 = vadd.f32 %v1561, %v1612
      %v1614 = vpop.f32.mrb[0].mxu0
      %v1615 = vpop.f32.mrb[0].mxu0
      %v1616 = vadd.f32 %v1561, %v1615
      %v1617 = vpop.f32.mrb[0].mxu0
      %1618 = vdwg.mxu0
      %v1619 = vadd.f32 %v1613, %v957
      %v1620 = vadd.f32 %v1616, %v958
      %v1621 = vld [vmem:[%s815] sm:$0x1]
      %v1622 = vld [vmem:[%s818] sm:$0x1]
      %v1623 = vsel %vm983, %v1619, 0.0
      %1624 = vadd.xlane.f32.xlu0 %v1623
      %v1625 = vpop.xlane.xlu0 %1624
      %v1626 = vsel %vm983, %v1620, 0.0
      %1627 = vadd.xlane.f32.xlu0 %v1626
      %v1628 = vpop.xlane.xlu0 %1627
      %v1629 = vrcp.pop 32.0
      %v1630 = vmul.f32 %v1625, %v1629
      %v1631 = vmul.f32 %v1628, %v1629
      %v1632 = vsub.f32 %v1619, %v1630
      %v1633 = vsub.f32 %v1620, %v1631
      %v1634 = vmul.f32 %v1632, %v1632
      %v1635 = vmul.f32 %v1633, %v1633
      %v1636 = vsel %vm983, %v1634, 0.0
      %1637 = vadd.xlane.f32.xlu0 %v1636
      %v1638 = vpop.xlane.xlu0 %1637
      %v1639 = vsel %vm983, %v1635, 0.0
      %1640 = vadd.xlane.f32.xlu0 %v1639
      %v1641 = vpop.xlane.xlu0 %1640
      %v1642 = vmul.f32 %v1638, %v1629
      %v1643 = vmul.f32 %v1641, %v1629
      %v1644 = vadd.f32 %v1642, 1e-12
      %v1645 = vadd.f32 %v1643, 1e-12
      %v1646 = vrsqrt.pop %v1644
      %v1647 = vrsqrt.pop %v1645
      %v1648 = vmul.f32 %v1632, %v1646
      %v1649 = vmul.f32 %v1633, %v1647
      %v1651 = vlaneseq
      %v1652 = vshrl.u32 %v1651, 7
      %v1653 = vsub.s32 0, %v1652
      %v1654 = vrot.slane %v1621, %v1653
      %v1656 = vmul.f32 %v1648, %v1654
      %v1657 = vmul.f32 %v1649, %v1654
      %v1659 = vlaneseq
      %v1660 = vshrl.u32 %v1659, 7
      %v1661 = vsub.s32 0, %v1660
      %v1662 = vrot.slane %v1622, %v1661
      %v1664 = vadd.f32 %v1656, %v1662
      %v1665 = vadd.f32 %v1657, %v1662
      %v1666 = vld [vmem:[%s823] sm:$0xf]
      %v1667 = vld [vmem:[%s823 + $0x4] sm:$0xf]
      %v1668 = vld [vmem:[%s823 + $0x8] sm:$0xf]
      %v1669 = vld [vmem:[%s823 + $0xc] sm:$0xf]
      %v1670 = vpack.c.bf16 %v1665, %v1664
      %v1671 = vld [vmem:[%s826] sm:$0x1]
      %v1673 = vlaneseq
      %v1674 = vshrl.u32 %v1673, 7
      %v1675 = vsub.s32 0, %v1674
      %v1676 = vrot.slane %v1671, %v1675
      %v1682 = vunpack.c.l.b16 %v1666
      %v1683 = vunpack.c.l.b16 %v1667
      %v1684 = vunpack.c.l.b16 %v1668
      %v1685 = vunpack.c.l.b16 %v1669
      %v1686 = vpack.c.b16 %v1683, %v1682
      %v1687 = vpack.c.b16 %v1685, %v1684
      %v1691 = vsel %vm983, %v1670, 0
      %1693 = vmatprep.subr.bf16.mxu0 0
      %1694 = vmatpush1.bf16.msra.mxu0 %v1686
      %1695 = vmatprep.subr.bf16.mxu0 0
      %1696 = vmatpush1.bf16.msra.mxu0 %v1687
      %1697 = vmatprep.subr.bf16.mxu0 0
      %1698 = vmatpush1.bf16.msra.mxu0 0
      %1699 = vmatprep.subr.bf16.mxu0 0
      %1700 = vmatpush1.bf16.msra.mxu0 0
      %1701 = vmatprep.subr.bf16.mxu0 0
      %1702 = vmatpush1.bf16.msra.mxu0 0
      %1703 = vmatprep.subr.bf16.mxu0 0
      %1704 = vmatpush1.bf16.msra.mxu0 0
      %1705 = vmatprep.subr.bf16.mxu0 0
      %1706 = vmatpush1.bf16.msra.mxu0 0
      %1707 = vmatprep.subr.bf16.mxu0 0
      %1708 = vmatpush1.bf16.msra.mxu0 0
      %1709 = vmatprep.subr.bf16.mxu0 0
      %1710 = vmatpush1.bf16.msra.mxu0 0
      %1711 = vmatprep.subr.bf16.mxu0 0
      %1712 = vmatpush1.bf16.msra.mxu0 0
      %1713 = vmatprep.subr.bf16.mxu0 0
      %1714 = vmatpush1.bf16.msra.mxu0 0
      %1715 = vmatprep.subr.bf16.mxu0 0
      %1716 = vmatpush1.bf16.msra.mxu0 0
      %1717 = vmatprep.subr.bf16.mxu0 0
      %1718 = vmatpush1.bf16.msra.mxu0 0
      %1719 = vmatprep.subr.bf16.mxu0 0
      %1720 = vmatpush1.bf16.msra.mxu0 0
      %1721 = vmatprep.subr.bf16.mxu0 0
      %1722 = vmatpush1.bf16.msra.mxu0 0
      %1723 = vmatprep.subr.bf16.mxu0 0
      %1724 = vmatpush1.bf16.msra.mxu0 0
      %1725 = vmatprep.mubr.bf16.mxu0 0
      %1726 = vmatmul.mubr.bf16.gmra.mrb[0].mxu0 %v1691
      %v1727 = vpop.f32.mrb[0].mxu0
      %v1728 = vadd.f32 %v1676, %v1727
      %v1729 = vpop.f32.mrb[0].mxu0
      %v1730 = vpop.f32.mrb[0].mxu0
      %v1731 = vadd.f32 %v1676, %v1730
      %v1732 = vpop.f32.mrb[0].mxu0
      %1733 = vdwg.mxu0
      %v1734 = vmul.f32 %v1728, 0.5
      %v1735 = vmul.f32 %v1731, 0.5
      %v1736 = vmul.f32 %v1728, 0.70710677
      %v1737 = vmul.f32 %v1731, 0.70710677
      %v1738 = verf.f32.pop %v1736
      %v1739 = verf.f32.pop %v1737
      %v1740 = vadd.f32 %v1738, 1.0
      %v1741 = vadd.f32 %v1739, 1.0
      %v1742 = vmul.f32 %v1734, %v1740
      %v1743 = vmul.f32 %v1735, %v1741
      %v1744 = vld [vmem:[%s831] sm:$0xf]
      %v1745 = vld [vmem:[%s831 + $0x4] sm:$0xf]
      %v1746 = vld [vmem:[%s831 + $0x8] sm:$0xf]
      %v1747 = vld [vmem:[%s831 + $0xc] sm:$0xf]
      %v1748 = vld [vmem:[%s831 + $0x10] sm:$0xf]
      %v1749 = vld [vmem:[%s831 + $0x14] sm:$0xf]
      %v1750 = vld [vmem:[%s831 + $0x18] sm:$0xf]
      %v1751 = vld [vmem:[%s831 + $0x1c] sm:$0xf]
      %v1752 = vpack.c.bf16 %v1743, %v1742
      %v1753 = vld [vmem:[%s834] sm:$0x1]
      %v1755 = vlaneseq
      %v1756 = vshrl.u32 %v1755, 7
      %v1757 = vsub.s32 0, %v1756
      %v1758 = vrot.slane %v1753, %v1757
      %v1768 = vunpack.c.l.b16 %v1744
      %v1769 = vunpack.c.l.b16 %v1745
      %v1770 = vunpack.c.l.b16 %v1746
      %v1771 = vunpack.c.l.b16 %v1747
      %v1772 = vunpack.c.l.b16 %v1748
      %v1773 = vunpack.c.l.b16 %v1749
      %v1774 = vunpack.c.l.b16 %v1750
      %v1775 = vunpack.c.l.b16 %v1751
      %v1776 = vpack.c.b16 %v1769, %v1768
      %v1777 = vpack.c.b16 %v1771, %v1770
      %v1778 = vpack.c.b16 %v1773, %v1772
      %v1779 = vpack.c.b16 %v1775, %v1774
      %vm1784 = vcmask 523264
      %v1786 = vsel %vm1784, %v1752, 0
      %1788 = vmatprep.subr.bf16.mxu0 0
      %1789 = vmatpush1.bf16.msra.mxu0 %v1776
      %1790 = vmatprep.subr.bf16.mxu0 0
      %1791 = vmatpush1.bf16.msra.mxu0 %v1777
      %1792 = vmatprep.subr.bf16.mxu0 0
      %1793 = vmatpush1.bf16.msra.mxu0 %v1778
      %1794 = vmatprep.subr.bf16.mxu0 0
      %1795 = vmatpush1.bf16.msra.mxu0 %v1779
      %1796 = vmatprep.subr.bf16.mxu0 0
      %1797 = vmatpush1.bf16.msra.mxu0 0
      %1798 = vmatprep.subr.bf16.mxu0 0
      %1799 = vmatpush1.bf16.msra.mxu0 0
      %1800 = vmatprep.subr.bf16.mxu0 0
      %1801 = vmatpush1.bf16.msra.mxu0 0
      %1802 = vmatprep.subr.bf16.mxu0 0
      %1803 = vmatpush1.bf16.msra.mxu0 0
      %1804 = vmatprep.subr.bf16.mxu0 0
      %1805 = vmatpush1.bf16.msra.mxu0 0
      %1806 = vmatprep.subr.bf16.mxu0 0
      %1807 = vmatpush1.bf16.msra.mxu0 0
      %1808 = vmatprep.subr.bf16.mxu0 0
      %1809 = vmatpush1.bf16.msra.mxu0 0
      %1810 = vmatprep.subr.bf16.mxu0 0
      %1811 = vmatpush1.bf16.msra.mxu0 0
      %1812 = vmatprep.subr.bf16.mxu0 0
      %1813 = vmatpush1.bf16.msra.mxu0 0
      %1814 = vmatprep.subr.bf16.mxu0 0
      %1815 = vmatpush1.bf16.msra.mxu0 0
      %1816 = vmatprep.subr.bf16.mxu0 0
      %1817 = vmatpush1.bf16.msra.mxu0 0
      %1818 = vmatprep.subr.bf16.mxu0 0
      %1819 = vmatpush1.bf16.msra.mxu0 0
      %1820 = vmatprep.mubr.bf16.mxu0 0
      %1821 = vmatmul.mubr.bf16.gmra.mrb[0].mxu0 %v1786
      %v1822 = vpop.f32.mrb[0].mxu0
      %v1823 = vadd.f32 %v1758, %v1822
      %v1824 = vpop.f32.mrb[0].mxu0
      %v1825 = vpop.f32.mrb[0].mxu0
      %v1826 = vadd.f32 %v1758, %v1825
      %v1827 = vpop.f32.mrb[0].mxu0
      %1828 = vdwg.mxu0
      %v1829 = vadd.f32 %v1823, %v1664
      %v1830 = vadd.f32 %v1826, %v1665
      %v1831 = vld [vmem:[%s837] sm:$0x1]
      %v1832 = vld [vmem:[%s840] sm:$0x1]
      %v1833 = vsel %vm983, %v1829, 0.0
      %1834 = vadd.xlane.f32.xlu0 %v1833
      %v1835 = vpop.xlane.xlu0 %1834
      %v1836 = vsel %vm983, %v1830, 0.0
      %1837 = vadd.xlane.f32.xlu0 %v1836
      %v1838 = vpop.xlane.xlu0 %1837
      %v1839 = vmul.f32 %v1835, %v1629
      %v1840 = vmul.f32 %v1838, %v1629
      %v1841 = vsub.f32 %v1829, %v1839
      %v1842 = vsub.f32 %v1830, %v1840
      %v1843 = vmul.f32 %v1841, %v1841
      %v1844 = vmul.f32 %v1842, %v1842
      %v1845 = vsel %vm983, %v1843, 0.0
      %1846 = vadd.xlane.f32.xlu0 %v1845
      %v1847 = vpop.xlane.xlu0 %1846
      %v1848 = vsel %vm983, %v1844, 0.0
      %1849 = vadd.xlane.f32.xlu0 %v1848
      %v1850 = vpop.xlane.xlu0 %1849
      %v1851 = vmul.f32 %v1847, %v1629
      %v1852 = vmul.f32 %v1850, %v1629
      %v1853 = vadd.f32 %v1851, 1e-12
      %v1854 = vadd.f32 %v1852, 1e-12
      %v1855 = vrsqrt.pop %v1853
      %v1856 = vrsqrt.pop %v1854
      %v1857 = vmul.f32 %v1841, %v1855
      %v1858 = vmul.f32 %v1842, %v1856
      %v1860 = vlaneseq
      %v1861 = vshrl.u32 %v1860, 7
      %v1862 = vsub.s32 0, %v1861
      %v1863 = vrot.slane %v1831, %v1862
      %v1865 = vmul.f32 %v1857, %v1863
      %v1866 = vmul.f32 %v1858, %v1863
      %v1868 = vlaneseq
      %v1869 = vshrl.u32 %v1868, 7
      %v1870 = vsub.s32 0, %v1869
      %v1871 = vrot.slane %v1832, %v1870
      %v1873 = vadd.f32 %v1865, %v1871
      %v1874 = vadd.f32 %v1866, %v1871
      %1875 = vst.msk [vmem:[#allocation2] sm:$0xff] %vm983, %v1873
      %1876 = vst.msk [vmem:[#allocation2 + $0x8] sm:$0xff] %vm983, %v1874
      %p1877 = scmp.eq.s32.totalorder %s33, 1
      // Predicated region
      $region113: #{electra_forward.1} parent=107 // pred_check
        %p1878 = pneg %p1877
      $region114: #{electra_forward.1} parent=107 // pred_check_branch
        %1880 = sbr.rel (%p1878) target = $region116
      $region115: #{electra_forward.1} parent=107 // pred_region
        %v1881 = vld [vmem:[%s18] sm:$0xf]
        %v1882 = vld [vmem:[%s18 + $0x4] sm:$0xf]
        %v1883 = vld [vmem:[%s18 + $0x8] sm:$0xf]
        %v1884 = vld [vmem:[%s18 + $0xc] sm:$0xf]
        %v1885 = vpack.c.bf16 %v1874, %v1873
        %v1886 = vld [vmem:[%s19] sm:$0x1]
        %v1888 = vlaneseq
        %v1889 = vshrl.u32 %v1888, 7
        %v1890 = vsub.s32 0, %v1889
        %v1891 = vrot.slane %v1886, %v1890
        %v1897 = vunpack.c.l.b16 %v1881
        %v1898 = vunpack.c.l.b16 %v1882
        %v1899 = vunpack.c.l.b16 %v1883
        %v1900 = vunpack.c.l.b16 %v1884
        %v1901 = vpack.c.b16 %v1898, %v1897
        %v1902 = vpack.c.b16 %v1900, %v1899
        %v1906 = vsel %vm983, %v1885, 0
        %1908 = vmatprep.subr.bf16.mxu0 0
        %1909 = vmatpush1.bf16.msra.mxu0 %v1901
        %1910 = vmatprep.subr.bf16.mxu0 0
        %1911 = vmatpush1.bf16.msra.mxu0 %v1902
        %1912 = vmatprep.subr.bf16.mxu0 0
        %1913 = vmatpush1.bf16.msra.mxu0 0
        %1914 = vmatprep.subr.bf16.mxu0 0
        %1915 = vmatpush1.bf16.msra.mxu0 0
        %1916 = vmatprep.subr.bf16.mxu0 0
        %1917 = vmatpush1.bf16.msra.mxu0 0
        %1918 = vmatprep.subr.bf16.mxu0 0
        %1919 = vmatpush1.bf16.msra.mxu0 0
        %1920 = vmatprep.subr.bf16.mxu0 0
        %1921 = vmatpush1.bf16.msra.mxu0 0
        %1922 = vmatprep.subr.bf16.mxu0 0
        %1923 = vmatpush1.bf16.msra.mxu0 0
        %1924 = vmatprep.subr.bf16.mxu0 0
        %1925 = vmatpush1.bf16.msra.mxu0 0
        %1926 = vmatprep.subr.bf16.mxu0 0
        %1927 = vmatpush1.bf16.msra.mxu0 0
        %1928 = vmatprep.subr.bf16.mxu0 0
        %1929 = vmatpush1.bf16.msra.mxu0 0
        %1930 = vmatprep.subr.bf16.mxu0 0
        %1931 = vmatpush1.bf16.msra.mxu0 0
        %1932 = vmatprep.subr.bf16.mxu0 0
        %1933 = vmatpush1.bf16.msra.mxu0 0
        %1934 = vmatprep.subr.bf16.mxu0 0
        %1935 = vmatpush1.bf16.msra.mxu0 0
        %1936 = vmatprep.subr.bf16.mxu0 0
        %1937 = vmatpush1.bf16.msra.mxu0 0
        %1938 = vmatprep.subr.bf16.mxu0 0
        %1939 = vmatpush1.bf16.msra.mxu0 0
        %1940 = vmatprep.mubr.bf16.mxu0 0
        %1941 = vmatmul.mubr.bf16.gmra.mrb[0].mxu0 %v1906
        %v1942 = vpop.f32.mrb[0].mxu0
        %v1943 = vadd.f32 %v1891, %v1942
        %v1944 = vpop.f32.mrb[0].mxu0
        %v1945 = vpop.f32.mrb[0].mxu0
        %v1946 = vadd.f32 %v1891, %v1945
        %v1947 = vpop.f32.mrb[0].mxu0
        %1948 = vdwg.mxu0
        %v1949 = vmul.f32 %v1943, 0.5
        %v1950 = vmul.f32 %v1946, 0.5
        %v1951 = vmul.f32 %v1943, 0.70710677
        %v1952 = vmul.f32 %v1946, 0.70710677
        %v1953 = verf.f32.pop %v1951
        %v1954 = verf.f32.pop %v1952
        %v1955 = vadd.f32 %v1953, 1.0
        %v1956 = vadd.f32 %v1954, 1.0
        %v1957 = vmul.f32 %v1949, %v1955
        %v1958 = vmul.f32 %v1950, %v1956
        %v1959 = vld [vmem:[%s20] sm:$0xf]
        %v1960 = vld [vmem:[%s20 + $0x4] sm:$0xf]
        %v1961 = vld [vmem:[%s20 + $0x8] sm:$0xf]
        %v1962 = vld [vmem:[%s20 + $0xc] sm:$0xf]
        %v1963 = vpack.c.bf16 %v1958, %v1957
        %v1964 = vld [vmem:[%s21] sm:$0x1]
        %v1966 = vlaneseq
        %v1967 = vshrl.u32 %v1966, 7
        %v1968 = vsub.s32 0, %v1967
        %v1969 = vrot.slane %v1964, %v1968
        %v1975 = vunpack.c.l.b16 %v1959
        %v1976 = vunpack.c.l.b16 %v1960
        %v1977 = vunpack.c.l.b16 %v1961
        %v1978 = vunpack.c.l.b16 %v1962
        %v1979 = vpack.c.b16 %v1976, %v1975
        %v1980 = vpack.c.b16 %v1978, %v1977
        %v1984 = vsel %vm983, %v1963, 0
        %1986 = vmatprep.subr.bf16.mxu0 0
        %1987 = vmatpush1.bf16.msra.mxu0 %v1979
        %1988 = vmatprep.subr.bf16.mxu0 0
        %1989 = vmatpush1.bf16.msra.mxu0 %v1980
        %1990 = vmatprep.subr.bf16.mxu0 0
        %1991 = vmatpush1.bf16.msra.mxu0 0
        %1992 = vmatprep.subr.bf16.mxu0 0
        %1993 = vmatpush1.bf16.msra.mxu0 0
        %1994 = vmatprep.subr.bf16.mxu0 0
        %1995 = vmatpush1.bf16.msra.mxu0 0
        %1996 = vmatprep.subr.bf16.mxu0 0
        %1997 = vmatpush1.bf16.msra.mxu0 0
        %1998 = vmatprep.subr.bf16.mxu0 0
        %1999 = vmatpush1.bf16.msra.mxu0 0
        %2000 = vmatprep.subr.bf16.mxu0 0
        %2001 = vmatpush1.bf16.msra.mxu0 0
        %2002 = vmatprep.subr.bf16.mxu0 0
        %2003 = vmatpush1.bf16.msra.mxu0 0
        %2004 = vmatprep.subr.bf16.mxu0 0
        %2005 = vmatpush1.bf16.msra.mxu0 0
        %2006 = vmatprep.subr.bf16.mxu0 0
        %2007 = vmatpush1.bf16.msra.mxu0 0
        %2008 = vmatprep.subr.bf16.mxu0 0
        %2009 = vmatpush1.bf16.msra.mxu0 0
        %2010 = vmatprep.subr.bf16.mxu0 0
        %2011 = vmatpush1.bf16.msra.mxu0 0
        %2012 = vmatprep.subr.bf16.mxu0 0
        %2013 = vmatpush1.bf16.msra.mxu0 0
        %2014 = vmatprep.subr.bf16.mxu0 0
        %2015 = vmatpush1.bf16.msra.mxu0 0
        %2016 = vmatprep.subr.bf16.mxu0 0
        %2017 = vmatpush1.bf16.msra.mxu0 0
        %2018 = vmatprep.mubr.bf16.mxu0 0
        %2019 = vmatmul.mubr.bf16.gmra.mrb[0].mxu0 %v1984
        %v2020 = vpop.f32.mrb[0].mxu0
        %v2021 = vadd.f32 %v1969, %v2020
        %v2022 = vpop.f32.mrb[0].mxu0
        %v2023 = vpop.f32.mrb[0].mxu0
        %v2024 = vadd.f32 %v1969, %v2023
        %v2025 = vpop.f32.mrb[0].mxu0
        %2026 = vdwg.mxu0
        %vm2027 = vcmask 15360
        %2028 = vst.msk [vmem:[%s22] sm:$0xff] %vm2027, %v2021
        %2029 = vst.msk [vmem:[%s22 + $0x8] sm:$0xff] %vm2027, %v2024
      $region116: #{electra_forward.1} parent=107 // pred_fallthru
        _
      // Predicated region
      $region117: #{electra_forward.1} parent=107 // pred_check
        %p2030 = pneg %p568
      $region118: #{electra_forward.1} parent=107 // pred_check_branch
        %2032 = sbr.rel (%p2030) target = $region120
      $region119: #{electra_forward.1} parent=107 // pred_region
        _
      $region120: #{electra_forward.1} parent=107 // pred_fallthru
        _
      // Predicated region
      $region121: #{electra_forward.1} parent=107 // pred_check
        %p2033 = pneg %p568
      $region122: #{electra_forward.1} parent=107 // pred_check_branch
        %2035 = sbr.rel (%p2033) target = $region124
      $region123: #{electra_forward.1} parent=107 // pred_region
        _
      $region124: #{electra_forward.1} parent=107 // pred_fallthru
        _
    $region108: #{electra_forward.1} parent=5 // pred_fallthru
      _
    %p2036 = scmp.le.s32.totalorder 2, %s28
    // Predicated region
    $region125: #{electra_forward.1} parent=5 // pred_check
      %p2037 = pneg %p2036
    $region126: #{electra_forward.1} parent=5 // pred_check_branch
      %2039 = sbr.rel (%p2037) target = $region128
    $region127: #{electra_forward.1} parent=5 // pred_region
      %s2040 = ssub.s32 %s28, 2
    $region128: #{electra_forward.1} parent=5 // pred_fallthru
      _
  $region6: #{electra_forward.1} parent=0 // loop_footer
    %s32 = sadd.s32 1, %s28
  $region7: #{electra_forward.1} parent=0 // loop_footer_branch
    %27 = sbr.rel target = $region3
  $region8: #{electra_forward.1} parent=0 // loop_exit
    _

</llo_original>
